<compile_context>
chip_gen: v7x
topology: tpu7x:2x2x1
jax: 0.10.0
libtpu: 0.0.40
codegen_flags: <defaults>
</compile_context>

<pallas_src>
import math
from functools import partial

import jax
import jax.numpy as jnp
from jax.experimental import pallas as pl
from jax.experimental.pallas import tpu as pltpu


# ----------------------------- kernel ---------------------------------------

def _layernorm(x, gamma, beta, eps=1e-5):
    mu = jnp.mean(x, axis=-1, keepdims=True)
    var = jnp.mean((x - mu) ** 2, axis=-1, keepdims=True)
    return (x - mu) * jax.lax.rsqrt(var + eps) * gamma + beta


def encoder_stack_kernel(x_ref, mask_ref,
                         wqkv_ref, wo_ref, wff1_ref, wff2_ref,
                         vece_ref, vech_ref,
                         out_ref,
                         *, heads, head_dim, embed_size, seq_len, block_batch):
    """One grid step = (one batch block, one layer).

    grid = (N // B_blk, L).  out_ref's block index is constant across the layer
    axis, so it stays VMEM-resident and doubles as the residual-stream
    accumulator for all L layers of this batch block.
    """
    l = pl.program_id(1)

    B, S, E = block_batch, seq_len, embed_size
    H, hd = heads, head_dim
    M = B * S
    G = B * H
    f32 = jnp.float32
    bf16 = jnp.bfloat16

    # Initialize the resident residual stream with the embeddings.
    @pl.when(l == 0)
    def _():
        out_ref[...] = x_ref[...]

    # ---- resident, stacked per-layer weights: just index layer l ------------
    w_qkv = wqkv_ref[l]                      # (E, 3E)  bf16 (Q pre-scaled)
    w_o = wo_ref[l]                          # (E, E)   bf16
    w_f1 = wff1_ref[l]                       # (E, Hid) bf16
    w_f2 = wff2_ref[l]                       # (Hid, E) bf16
    vecs = vece_ref[l]                       # (6, E)   f32
    bo, g1, b1 = vecs[0:1], vecs[1:2], vecs[2:3]
    g2, b2, bff2 = vecs[3:4], vecs[4:5], vecs[5:6]
    bff1 = vech_ref[l]                       # (1, Hid) f32

    x = out_ref[...]                         # (B, S, E) f32 residual stream
    xf = x.reshape(M, E)                     # leading merge (layout-free)

    # ---- fused QKV projection (one (M, 3E) matmul) ---------------------------
    qkv = jnp.dot(xf.astype(bf16), w_qkv,
                  preferred_element_type=f32)                     # (M, 3E) f32

    # ---- head-major views via batched minor-dim transposes -------------------
    qkv_t = jnp.swapaxes(qkv.reshape(B, S, 3 * E), 1, 2)          # (B, 3E, S)
    qkv_t = qkv_t.reshape(B, 3, E, S)
    q_t = qkv_t[:, 0].reshape(G, hd, S)                           # (G, hd, S)
    k_t = qkv_t[:, 1].reshape(G, hd, S)
    v_t = qkv_t[:, 2].reshape(G, hd, S)
    q = jnp.swapaxes(q_t, 1, 2)                                   # (G, S, hd)

    # ---- attention scores (+ pre-scaled additive key mask) -------------------
    scores = jnp.einsum('gqd,gdk->gqk', q.astype(bf16), k_t.astype(bf16),
                        preferred_element_type=f32)               # (G, S, S)
    mask_add = mask_ref[...]                                      # (B, 1, S) f32
    scores = (scores.reshape(B, H, S, S)
              + mask_add[:, :, None, :]).reshape(G, S, S)

    # softmax in f32 (EUP exp + approx reciprocal)
    m = jnp.max(scores, axis=-1, keepdims=True)
    p = jnp.exp(scores - m)
    attn = p * pl.reciprocal(jnp.sum(p, axis=-1, keepdims=True), approx=True)

    # attention output in transposed layout, then one retile back to (M, E)
    ov_t = jnp.einsum('gdk,gqk->gdq', v_t.astype(bf16), attn.astype(bf16),
                      preferred_element_type=f32)                 # (G, hd, S)
    attn_cat = jnp.swapaxes(ov_t.reshape(B, E, S), 1, 2).reshape(M, E)

    # ---- output projection + residual + LayerNorm 1 --------------------------
    attn_out = jnp.dot(attn_cat.astype(bf16), w_o,
                       preferred_element_type=f32) + bo
    h1 = _layernorm(attn_out + xf, g1, b1)        # dropout == identity (eval)

    # ---- feed-forward + residual + LayerNorm 2 --------------------------------
    f = jnp.dot(h1.astype(bf16), w_f1, preferred_element_type=f32) + bff1
    f = jnp.maximum(f, 0.0)
    f = jnp.dot(f.astype(bf16), w_f2, preferred_element_type=f32) + bff2
    x_new = _layernorm(f + h1, g2, b2)

    # residual stream stays resident for the next layer; HBM writeback happens
    # automatically when the batch block changes / at grid end.
    out_ref[...] = x_new.reshape(B, S, E)


# ----------------------------- wrapper ---------------------------------------

def _pick_block_batch(n, seq_len):
    """Largest divisor of n keeping >=2 batch blocks (v7x: 2 TCs) and modest rows."""
    best = 1
    for d in range(1, n + 1):
        if n % d:
            continue
        if n >= 2 and n // d < 2:
            continue
        if d * seq_len > 1024:
            continue
        best = d
    return best


def _nbytes(a):
    return int(a.size) * int(a.dtype.itemsize)


def encoder_forward(tokens, mask, kparams, *, heads, block_batch=None):
    """tokens: (N,S) int32, mask: (N,1,S) {0,1} float32 -> (N,S,E) float32."""
    N, S = tokens.shape
    E = kparams["word_embedding"].shape[1]
    L = kparams["w_qkv"].shape[0]
    if block_batch is None:
        block_batch = _pick_block_batch(N, S)
    nb = N // block_batch

    # Embedding gathers stay in XLA glue.
    word = kparams["word_embedding"][tokens]                           # (N,S,E)
    pos = kparams["position_embedding"][jnp.arange(S, dtype=jnp.int32)][None]
    x = (word + pos).astype(jnp.float32)

    # Additive key mask, already divided by sqrt(E) (Q weights are pre-scaled),
    # so no per-layer scale multiply is needed in the kernel.
    scale = 1.0 / math.sqrt(E)
    mask_add = jnp.where(mask == 0.0, jnp.float32(-1e20 * scale), jnp.float32(0.0))

    w_qkv, w_o = kparams["w_qkv"], kparams["w_o"]
    w_ff1, w_ff2 = kparams["w_ff1"], kparams["w_ff2"]
    vec_e, vec_h = kparams["vec_e"], kparams["vec_h"]

    kernel = partial(encoder_stack_kernel, heads=heads, head_dim=E // heads,
                     embed_size=E, seq_len=S, block_batch=block_batch)

    def resident_spec(arr):
        # Whole stacked array lives in VMEM: constant block index => DMA'd once.
        return pl.BlockSpec(arr.shape, lambda b, l: (0, 0, 0))

    # VMEM budget from the actual footprint (resident weights x2 buffers +
    # double-buffered activation blocks), capped for v7x headroom.
    weight_bytes = sum(_nbytes(a) for a in (w_qkv, w_o, w_ff1, w_ff2, vec_e, vec_h))
    block_bytes = block_batch * S * E * 4
    mask_bytes = block_batch * S * 4
    needed = 2 * weight_bytes + 2 * (2 * block_bytes + mask_bytes)
    vmem_limit = int(min(48 * 1024 * 1024, max(needed + (8 << 20), 16 << 20)))

    return pl.pallas_call(
        kernel,
        out_shape=jax.ShapeDtypeStruct((N, S, E), jnp.float32),
        grid=(nb, L),
        in_specs=[
            pl.BlockSpec((block_batch, S, E), lambda b, l: (b, 0, 0)),  # embeddings
            pl.BlockSpec((block_batch, 1, S), lambda b, l: (b, 0, 0)),  # additive mask
            resident_spec(w_qkv), resident_spec(w_o),
            resident_spec(w_ff1), resident_spec(w_ff2),
            resident_spec(vec_e), resident_spec(vec_h),
        ],
        out_specs=pl.BlockSpec((block_batch, S, E), lambda b, l: (b, 0, 0)),
        compiler_params=pltpu.CompilerParams(
            dimension_semantics=("parallel", "arbitrary"),
            vmem_limit_bytes=vmem_limit),
    )(x, mask_add, w_qkv, w_o, w_ff1, w_ff2, vec_e, vec_h)


# ----------------------------- parameters ------------------------------------

def init_params(key, *, vocab, max_length, embed_size, heads, num_layers,
                forward_expansion):
    """Canonical (PyTorch-layout) parameters used by the reference."""
    hd = embed_size // heads
    hidden = forward_expansion * embed_size
    keys = jax.random.split(key, 2 + num_layers)

    def uni(k, fan_in, shape):
        b = 1.0 / math.sqrt(fan_in)
        return jax.random.uniform(k, shape, jnp.float32, -b, b)

    layers = []
    for i in range(num_layers):
        lk = jax.random.split(keys[2 + i], 9)
        layers.append(dict(
            wq_h=uni(lk[0], hd, (hd, hd)),        # nn.Linear (out, in), no bias
            wk_h=uni(lk[1], hd, (hd, hd)),
            wv_h=uni(lk[2], hd, (hd, hd)),
            wo=uni(lk[3], embed_size, (embed_size, embed_size)),
            bo=uni(lk[4], embed_size, (embed_size,)),
            w1=uni(lk[5], embed_size, (hidden, embed_size)),
            b1=uni(lk[6], embed_size, (hidden,)),
            w2=uni(lk[7], hidden, (embed_size, hidden)),
            b2=uni(lk[8], hidden, (embed_size,)),
        ))
    return dict(
        word_embedding=jax.random.normal(keys[0], (vocab, embed_size), jnp.float32),
        position_embedding=jax.random.normal(keys[1], (max_length, embed_size), jnp.float32),
        layers=layers,
    )


def pack_kernel_params(params, *, heads):
    """One-time (init-side) transform: fuse/stack per-layer weights, fold the
    1/sqrt(E) scale into the Q columns, cast MXU operands to bf16."""
    E = params["word_embedding"].shape[1]
    scale = 1.0 / math.sqrt(E)
    eye_h = jnp.eye(heads, dtype=jnp.float32)
    bf16 = jnp.bfloat16

    w_qkv, w_o, w_ff1, w_ff2, vec_e, vec_h = [], [], [], [], [], []
    for lp in params["layers"]:
        # Shared per-head (hd, hd) linears realised as block-diagonal (E, E)
        # column-form weights (y = x @ W); fine while E fits one MXU tile.
        wq = jnp.kron(eye_h, lp["wq_h"].T) * scale      # Q pre-scaled by 1/sqrt(E)
        wk = jnp.kron(eye_h, lp["wk_h"].T)
        wv = jnp.kron(eye_h, lp["wv_h"].T)
        w_qkv.append(jnp.concatenate([wq, wk, wv], axis=1))      # (E, 3E)
        w_o.append(lp["wo"].T)                                   # (E, E)
        w_ff1.append(lp["w1"].T)                                 # (E, Hid)
        w_ff2.append(lp["w2"].T)                                 # (Hid, E)
        ones = jnp.ones((E,), jnp.float32)
        zeros = jnp.zeros((E,), jnp.float32)
        # rows: fc_out bias, LN1 gamma, LN1 beta, LN2 gamma, LN2 beta, FFN-2 bias
        vec_e.append(jnp.stack([lp["bo"], ones, zeros, ones, zeros, lp["b2"]], 0))
        vec_h.append(lp["b1"][None, :])

    return dict(
        word_embedding=params["word_embedding"],
        position_embedding=params["position_embedding"],
        w_qkv=jnp.stack(w_qkv).astype(bf16),
        w_o=jnp.stack(w_o).astype(bf16),
        w_ff1=jnp.stack(w_ff1).astype(bf16),
        w_ff2=jnp.stack(w_ff2).astype(bf16),
        vec_e=jnp.stack(vec_e),
        vec_h=jnp.stack(vec_h),
    )


# ----------------------------- pure-JAX reference ----------------------------

def ref_encoder(tokens, mask, params, *, heads):
    N, S = tokens.shape
    E = params["word_embedding"].shape[1]
    hd = E // heads
    x = (params["word_embedding"][tokens]
         + params["position_embedding"][jnp.arange(S)][None]).astype(jnp.float32)

    def ln(v):
        mu = jnp.mean(v, -1, keepdims=True)
        var = jnp.mean((v - mu) ** 2, -1, keepdims=True)
        return (v - mu) * jax.lax.rsqrt(var + 1e-5)   # gamma=1, beta=0

    for lp in params["layers"]:
        xr = x.reshape(N, S, heads, hd)
        q = jnp.einsum('nshd,od->nsho', xr, lp["wq_h"])
        k = jnp.einsum('nshd,od->nsho', xr, lp["wk_h"])
        v = jnp.einsum('nshd,od->nsho', xr, lp["wv_h"])
        energy = jnp.einsum('nqho,nkho->nhqk', q, k)
        energy = jnp.where(mask[:, :, None, :] == 0.0, -1e20, energy)
        attn = jax.nn.softmax(energy / math.sqrt(E), axis=-1)
        att_out = jnp.einsum('nhqk,nkho->nqho', attn, v).reshape(N, S, E)
        att_out = att_out @ lp["wo"].T + lp["bo"]
        h1 = ln(att_out + x)
        f = jnp.maximum(h1 @ lp["w1"].T + lp["b1"], 0.0)
        f = f @ lp["w2"].T + lp["b2"]
        x = ln(f + h1)
    return x


# ----------------------------- main -------------------------------------------

if __name__ == "__main__":
    N, S = 4, 8
    EMBED, HEADS, LAYERS, EXPANSION = 32, 4, 2, 4
    VOCAB, MAX_LEN = 50, 16

    key = jax.random.PRNGKey(0)
    pkey, tkey = jax.random.split(key)
    params = init_params(pkey, vocab=VOCAB, max_length=MAX_LEN,
                         embed_size=EMBED, heads=HEADS,
                         num_layers=LAYERS, forward_expansion=EXPANSION)
    kparams = pack_kernel_params(params, heads=HEADS)   # one-time weight packing

    tokens = jax.random.randint(tkey, (N, S), 0, VOCAB, dtype=jnp.int32)
    mask = jnp.ones((N, 1, S), jnp.float32)
    mask = mask.at[1, 0, S - 2:].set(0.0)     # mask last 2 keys of batch 1
    mask = mask.at[3, 0, S - 3:].set(0.0)     # mask last 3 keys of batch 3

    out = encoder_forward(tokens, mask, kparams, heads=HEADS)
    out = jax.block_until_ready(out)

    ref = ref_encoder(tokens, mask, params, heads=HEADS)
    assert out.shape == (N, S, EMBED)
    # bf16 MXU operands + approx reciprocal in the kernel -> loosened tolerance
    assert jnp.allclose(out, ref, rtol=5e-2, atol=5e-2), "mismatch vs reference"

    print("KERNEL_OK")
</pallas_src>

<mosaic_0001>
module attributes {stable_mosaic.version = 11 : i64} {
  func.func @encoder_stack_kernel(%arg0: i32, %arg1: i32, %arg2: memref<2x8x32xf32, #tpu.memory_space<vmem>>, %arg3: memref<2x1x8xf32, #tpu.memory_space<vmem>>, %arg4: memref<2x32x96xbf16, #tpu.memory_space<vmem>>, %arg5: memref<2x32x32xbf16, #tpu.memory_space<vmem>>, %arg6: memref<2x32x128xbf16, #tpu.memory_space<vmem>>, %arg7: memref<2x128x32xbf16, #tpu.memory_space<vmem>>, %arg8: memref<2x6x32xf32, #tpu.memory_space<vmem>>, %arg9: memref<2x1x128xf32, #tpu.memory_space<vmem>>, %arg10: memref<2x8x32xf32, #tpu.memory_space<vmem>>) attributes {dimension_semantics = [#tpu.dimension_semantics<parallel>, #tpu.dimension_semantics<arbitrary>], iteration_bounds = array<i64: 2, 2>, scalar_prefetch = 0 : i64, scratch_operands = 0 : i64, tpu.core_type = #tpu.core_type<tc>, window_params = [{transform_indices = @transform_0, window_bounds = array<i64: 2, 8, 32>}, {transform_indices = @transform_1, window_bounds = array<i64: 2, 1, 8>}, {pipeline_mode = #tpu.pipeline_mode<synchronous>, transform_indices = @transform_2, window_bounds = array<i64: 2, 32, 96>}, {pipeline_mode = #tpu.pipeline_mode<synchronous>, transform_indices = @transform_3, window_bounds = array<i64: 2, 32, 32>}, {pipeline_mode = #tpu.pipeline_mode<synchronous>, transform_indices = @transform_4, window_bounds = array<i64: 2, 32, 128>}, {pipeline_mode = #tpu.pipeline_mode<synchronous>, transform_indices = @transform_5, window_bounds = array<i64: 2, 128, 32>}, {pipeline_mode = #tpu.pipeline_mode<synchronous>, transform_indices = @transform_6, window_bounds = array<i64: 2, 6, 32>}, {pipeline_mode = #tpu.pipeline_mode<synchronous>, transform_indices = @transform_7, window_bounds = array<i64: 2, 1, 128>}, {transform_indices = @transform_8, window_bounds = array<i64: 2, 8, 32>}]} {
    %c0_i32 = arith.constant 0 : i32
    %0 = arith.cmpi eq, %arg1, %c0_i32 : i32
    %1 = arith.extui %0 : i1 to i32
    %c0_i32_0 = arith.constant 0 : i32
    %2 = arith.cmpi ne, %1, %c0_i32_0 : i32
    scf.if %2 {
      %c0_39 = arith.constant 0 : index
      %c0_40 = arith.constant 0 : index
      %c0_41 = arith.constant 0 : index
      %131 = vector.load %arg2[%c0_39, %c0_40, %c0_41] : memref<2x8x32xf32, #tpu.memory_space<vmem>>, vector<2x8x32xf32>
      %c0_42 = arith.constant 0 : index
      %c0_43 = arith.constant 0 : index
      %c0_44 = arith.constant 0 : index
      %132 = vector.load %arg10[%c0_42, %c0_43, %c0_44] : memref<2x8x32xf32, #tpu.memory_space<vmem>>, vector<2x8x32xf32>
      tpu.vector_store %arg10[%c0_42, %c0_43, %c0_44], %131 {strides = array<i32>} : memref<2x8x32xf32, #tpu.memory_space<vmem>>, vector<2x8x32xf32>,
    } else {
    }
    %3 = arith.index_cast %arg1 : i32 to index
    %c0 = arith.constant 0 : index
    %c0_1 = arith.constant 0 : index
    %4 = vector.load %arg4[%3, %c0, %c0_1] : memref<2x32x96xbf16, #tpu.memory_space<vmem>>, vector<1x32x96xbf16>
    %5 = vector.shape_cast %4 : vector<1x32x96xbf16> to vector<32x96xbf16>
    %6 = arith.index_cast %arg1 : i32 to index
    %c0_2 = arith.constant 0 : index
    %c0_3 = arith.constant 0 : index
    %7 = vector.load %arg5[%6, %c0_2, %c0_3] : memref<2x32x32xbf16, #tpu.memory_space<vmem>>, vector<1x32x32xbf16>
    %8 = vector.shape_cast %7 : vector<1x32x32xbf16> to vector<32x32xbf16>
    %9 = arith.index_cast %arg1 : i32 to index
    %c0_4 = arith.constant 0 : index
    %c0_5 = arith.constant 0 : index
    %10 = vector.load %arg6[%9, %c0_4, %c0_5] : memref<2x32x128xbf16, #tpu.memory_space<vmem>>, vector<1x32x128xbf16>
    %11 = vector.shape_cast %10 : vector<1x32x128xbf16> to vector<32x128xbf16>
    %12 = arith.index_cast %arg1 : i32 to index
    %c0_6 = arith.constant 0 : index
    %c0_7 = arith.constant 0 : index
    %13 = vector.load %arg7[%12, %c0_6, %c0_7] : memref<2x128x32xbf16, #tpu.memory_space<vmem>>, vector<1x128x32xbf16>
    %14 = vector.shape_cast %13 : vector<1x128x32xbf16> to vector<128x32xbf16>
    %15 = arith.index_cast %arg1 : i32 to index
    %c0_8 = arith.constant 0 : index
    %c0_9 = arith.constant 0 : index
    %16 = vector.load %arg8[%15, %c0_8, %c0_9] : memref<2x6x32xf32, #tpu.memory_space<vmem>>, vector<1x6x32xf32>
    %17 = vector.shape_cast %16 : vector<1x6x32xf32> to vector<6x32xf32>
    %18 = vector.extract_strided_slice %17 {offsets = [0, 0], sizes = [1, 32], strides = [1, 1]} : vector<6x32xf32> to vector<1x32xf32>
    %19 = vector.extract_strided_slice %17 {offsets = [1, 0], sizes = [1, 32], strides = [1, 1]} : vector<6x32xf32> to vector<1x32xf32>
    %20 = vector.extract_strided_slice %17 {offsets = [2, 0], sizes = [1, 32], strides = [1, 1]} : vector<6x32xf32> to vector<1x32xf32>
    %21 = vector.extract_strided_slice %17 {offsets = [3, 0], sizes = [1, 32], strides = [1, 1]} : vector<6x32xf32> to vector<1x32xf32>
    %22 = vector.extract_strided_slice %17 {offsets = [4, 0], sizes = [1, 32], strides = [1, 1]} : vector<6x32xf32> to vector<1x32xf32>
    %23 = vector.extract_strided_slice %17 {offsets = [5, 0], sizes = [1, 32], strides = [1, 1]} : vector<6x32xf32> to vector<1x32xf32>
    %24 = arith.index_cast %arg1 : i32 to index
    %c0_10 = arith.constant 0 : index
    %c0_11 = arith.constant 0 : index
    %25 = vector.load %arg9[%24, %c0_10, %c0_11] : memref<2x1x128xf32, #tpu.memory_space<vmem>>, vector<1x1x128xf32>
    %26 = vector.shape_cast %25 : vector<1x1x128xf32> to vector<1x128xf32>
    %c0_12 = arith.constant 0 : index
    %c0_13 = arith.constant 0 : index
    %c0_14 = arith.constant 0 : index
    %27 = vector.load %arg10[%c0_12, %c0_13, %c0_14] : memref<2x8x32xf32, #tpu.memory_space<vmem>>, vector<2x8x32xf32>
    %28 = vector.shape_cast %27 : vector<2x8x32xf32> to vector<16x32xf32>
    %29 = arith.truncf %28 : vector<16x32xf32> to vector<16x32xbf16>
    %cst = arith.constant dense<0.000000e+00> : vector<16x96xf32>
    %30 = tpu.matmul %29, %5, %cst {dimension_numbers = #tpu.dot_dimension_numbers<[1], [0], [0], [1], [0, 0, 1, 1], [], []>} : vector<16x32xbf16>, vector<32x96xbf16>, vector<16x96xf32> -> vector<16x96xf32>
    %31 = vector.shape_cast %30 : vector<16x96xf32> to vector<2x8x96xf32>
    %32 = tpu.transpose %31, [0, 2, 1] : vector<2x8x96xf32> -> vector<2x96x8xf32>
    %33 = vector.shape_cast %32 : vector<2x96x8xf32> to vector<2x3x32x8xf32>
    %34 = vector.extract_strided_slice %33 {offsets = [0, 0, 0, 0], sizes = [2, 1, 32, 8], strides = [1, 1, 1, 1]} : vector<2x3x32x8xf32> to vector<2x1x32x8xf32>
    %35 = vector.shape_cast %34 : vector<2x1x32x8xf32> to vector<2x32x8xf32>
    %36 = vector.shape_cast %35 : vector<2x32x8xf32> to vector<8x8x8xf32>
    %37 = vector.extract_strided_slice %33 {offsets = [0, 1, 0, 0], sizes = [2, 1, 32, 8], strides = [1, 1, 1, 1]} : vector<2x3x32x8xf32> to vector<2x1x32x8xf32>
    %38 = vector.shape_cast %37 : vector<2x1x32x8xf32> to vector<2x32x8xf32>
    %39 = vector.shape_cast %38 : vector<2x32x8xf32> to vector<8x8x8xf32>
    %40 = vector.extract_strided_slice %33 {offsets = [0, 2, 0, 0], sizes = [2, 1, 32, 8], strides = [1, 1, 1, 1]} : vector<2x3x32x8xf32> to vector<2x1x32x8xf32>
    %41 = vector.shape_cast %40 : vector<2x1x32x8xf32> to vector<2x32x8xf32>
    %42 = vector.shape_cast %41 : vector<2x32x8xf32> to vector<8x8x8xf32>
    %43 = tpu.transpose %36, [0, 2, 1] : vector<8x8x8xf32> -> vector<8x8x8xf32>
    %44 = arith.truncf %43 : vector<8x8x8xf32> to vector<8x8x8xbf16>
    %45 = arith.truncf %39 : vector<8x8x8xf32> to vector<8x8x8xbf16>
    "tpu.trace_start"() <{level = 10 : i32, message = "gqd,gdk->gqk"}> : () -> ()
    %cst_15 = arith.constant dense<0.000000e+00> : vector<8x8x8xf32>
    %46 = tpu.matmul %44, %45, %cst_15 {dimension_numbers = #tpu.dot_dimension_numbers<[2], [1], [1], [2], [0, 0, 0, 1, 1, 2], [0], [0]>} : vector<8x8x8xbf16>, vector<8x8x8xbf16>, vector<8x8x8xf32> -> vector<8x8x8xf32>
    "tpu.trace_stop"() : () -> ()
    %c0_16 = arith.constant 0 : index
    %c0_17 = arith.constant 0 : index
    %c0_18 = arith.constant 0 : index
    %47 = vector.load %arg3[%c0_16, %c0_17, %c0_18] : memref<2x1x8xf32, #tpu.memory_space<vmem>>, vector<2x1x8xf32>
    %48 = vector.shape_cast %46 : vector<8x8x8xf32> to vector<2x4x8x8xf32>
    %49 = vector.shape_cast %47 : vector<2x1x8xf32> to vector<2x1x1x8xf32>
    %50 = vector.broadcast %49 : vector<2x1x1x8xf32> to vector<2x4x8x8xf32>
    %51 = arith.addf %48, %50 : vector<2x4x8x8xf32>
    %52 = vector.shape_cast %51 : vector<2x4x8x8xf32> to vector<8x8x8xf32>
    %cst_19 = arith.constant dense<0xFF800000> : vector<8x8xf32>
    %53 = vector.multi_reduction <maximumf>, %52, %cst_19 [2] : vector<8x8x8xf32> to vector<8x8xf32>
    %54 = vector.shape_cast %53 : vector<8x8xf32> to vector<8x8x1xf32>
    %55 = vector.broadcast %54 : vector<8x8x1xf32> to vector<8x8x8xf32>
    %56 = arith.subf %52, %55 : vector<8x8x8xf32>
    %57 = math.exp %56 : vector<8x8x8xf32>
    %cst_20 = arith.constant dense<0.000000e+00> : vector<8x8xf32>
    %58 = vector.multi_reduction <add>, %57, %cst_20 [2] : vector<8x8x8xf32> to vector<8x8xf32>
    %59 = vector.shape_cast %58 : vector<8x8xf32> to vector<8x8x1xf32>
    %60 = tpu.reciprocal %59 {approx = true} : vector<8x8x1xf32> -> vector<8x8x1xf32>
    %61 = vector.broadcast %60 : vector<8x8x1xf32> to vector<8x8x8xf32>
    %62 = arith.mulf %57, %61 : vector<8x8x8xf32>
    %63 = arith.truncf %42 : vector<8x8x8xf32> to vector<8x8x8xbf16>
    %64 = arith.truncf %62 : vector<8x8x8xf32> to vector<8x8x8xbf16>
    "tpu.trace_start"() <{level = 10 : i32, message = "gdk,gqk->gdq"}> : () -> ()
    %cst_21 = arith.constant dense<0.000000e+00> : vector<8x8x8xf32>
    %65 = tpu.matmul %63, %64, %cst_21 {dimension_numbers = #tpu.dot_dimension_numbers<[2], [2], [1], [1], [0, 0, 0, 1, 1, 1], [0], [0]>} : vector<8x8x8xbf16>, vector<8x8x8xbf16>, vector<8x8x8xf32> -> vector<8x8x8xf32>
    "tpu.trace_stop"() : () -> ()
    %66 = vector.shape_cast %65 : vector<8x8x8xf32> to vector<2x32x8xf32>
    %67 = tpu.transpose %66, [0, 2, 1] : vector<2x32x8xf32> -> vector<2x8x32xf32>
    %68 = vector.shape_cast %67 : vector<2x8x32xf32> to vector<16x32xf32>
    %69 = arith.truncf %68 : vector<16x32xf32> to vector<16x32xbf16>
    %cst_22 = arith.constant dense<0.000000e+00> : vector<16x32xf32>
    %70 = tpu.matmul %69, %8, %cst_22 {dimension_numbers = #tpu.dot_dimension_numbers<[1], [0], [0], [1], [0, 0, 1, 1], [], []>} : vector<16x32xbf16>, vector<32x32xbf16>, vector<16x32xf32> -> vector<16x32xf32>
    %71 = vector.broadcast %18 : vector<1x32xf32> to vector<16x32xf32>
    %72 = arith.addf %70, %71 : vector<16x32xf32>
    %73 = arith.addf %72, %28 : vector<16x32xf32>
    %cst_23 = arith.constant dense<0.000000e+00> : vector<16xf32>
    %74 = vector.multi_reduction <add>, %73, %cst_23 [1] : vector<16x32xf32> to vector<16xf32>
    %75 = vector.shape_cast %74 : vector<16xf32> to vector<16x1xf32>
    %cst_24 = arith.constant 3.200000e+01 : f32
    %76 = vector.broadcast %cst_24 : f32 to vector<16x1xf32>
    %77 = arith.divf %75, %76 : vector<16x1xf32>
    %78 = vector.broadcast %77 : vector<16x1xf32> to vector<16x32xf32>
    %79 = arith.subf %73, %78 : vector<16x32xf32>
    %80 = arith.mulf %79, %79 : vector<16x32xf32>
    %cst_25 = arith.constant dense<0.000000e+00> : vector<16xf32>
    %81 = vector.multi_reduction <add>, %80, %cst_25 [1] : vector<16x32xf32> to vector<16xf32>
    %82 = vector.shape_cast %81 : vector<16xf32> to vector<16x1xf32>
    %cst_26 = arith.constant 3.200000e+01 : f32
    %83 = vector.broadcast %cst_26 : f32 to vector<16x1xf32>
    %84 = arith.divf %82, %83 : vector<16x1xf32>
    %85 = vector.broadcast %77 : vector<16x1xf32> to vector<16x32xf32>
    %86 = arith.subf %73, %85 : vector<16x32xf32>
    %cst_27 = arith.constant 9.99999974E-6 : f32
    %87 = vector.broadcast %cst_27 : f32 to vector<16x1xf32>
    %88 = arith.addf %84, %87 : vector<16x1xf32>
    %89 = math.rsqrt %88 : vector<16x1xf32>
    %90 = vector.broadcast %89 : vector<16x1xf32> to vector<16x32xf32>
    %91 = arith.mulf %86, %90 : vector<16x32xf32>
    %92 = vector.broadcast %19 : vector<1x32xf32> to vector<16x32xf32>
    %93 = arith.mulf %91, %92 : vector<16x32xf32>
    %94 = vector.broadcast %20 : vector<1x32xf32> to vector<16x32xf32>
    %95 = arith.addf %93, %94 : vector<16x32xf32>
    %96 = arith.truncf %95 : vector<16x32xf32> to vector<16x32xbf16>
    %cst_28 = arith.constant dense<0.000000e+00> : vector<16x128xf32>
    %97 = tpu.matmul %96, %11, %cst_28 {dimension_numbers = #tpu.dot_dimension_numbers<[1], [0], [0], [1], [0, 0, 1, 1], [], []>} : vector<16x32xbf16>, vector<32x128xbf16>, vector<16x128xf32> -> vector<16x128xf32>
    %98 = vector.broadcast %26 : vector<1x128xf32> to vector<16x128xf32>
    %99 = arith.addf %97, %98 : vector<16x128xf32>
    %cst_29 = arith.constant 0.000000e+00 : f32
    %100 = vector.broadcast %cst_29 : f32 to vector<16x128xf32>
    %101 = arith.maximumf %99, %100 : vector<16x128xf32>
    %102 = arith.truncf %101 : vector<16x128xf32> to vector<16x128xbf16>
    %cst_30 = arith.constant dense<0.000000e+00> : vector<16x32xf32>
    %103 = tpu.matmul %102, %14, %cst_30 {dimension_numbers = #tpu.dot_dimension_numbers<[1], [0], [0], [1], [0, 0, 1, 1], [], []>} : vector<16x128xbf16>, vector<128x32xbf16>, vector<16x32xf32> -> vector<16x32xf32>
    %104 = vector.broadcast %23 : vector<1x32xf32> to vector<16x32xf32>
    %105 = arith.addf %103, %104 : vector<16x32xf32>
    %106 = arith.addf %105, %95 : vector<16x32xf32>
    %cst_31 = arith.constant dense<0.000000e+00> : vector<16xf32>
    %107 = vector.multi_reduction <add>, %106, %cst_31 [1] : vector<16x32xf32> to vector<16xf32>
    %108 = vector.shape_cast %107 : vector<16xf32> to vector<16x1xf32>
    %cst_32 = arith.constant 3.200000e+01 : f32
    %109 = vector.broadcast %cst_32 : f32 to vector<16x1xf32>
    %110 = arith.divf %108, %109 : vector<16x1xf32>
    %111 = vector.broadcast %110 : vector<16x1xf32> to vector<16x32xf32>
    %112 = arith.subf %106, %111 : vector<16x32xf32>
    %113 = arith.mulf %112, %112 : vector<16x32xf32>
    %cst_33 = arith.constant dense<0.000000e+00> : vector<16xf32>
    %114 = vector.multi_reduction <add>, %113, %cst_33 [1] : vector<16x32xf32> to vector<16xf32>
    %115 = vector.shape_cast %114 : vector<16xf32> to vector<16x1xf32>
    %cst_34 = arith.constant 3.200000e+01 : f32
    %116 = vector.broadcast %cst_34 : f32 to vector<16x1xf32>
    %117 = arith.divf %115, %116 : vector<16x1xf32>
    %118 = vector.broadcast %110 : vector<16x1xf32> to vector<16x32xf32>
    %119 = arith.subf %106, %118 : vector<16x32xf32>
    %cst_35 = arith.constant 9.99999974E-6 : f32
    %120 = vector.broadcast %cst_35 : f32 to vector<16x1xf32>
    %121 = arith.addf %117, %120 : vector<16x1xf32>
    %122 = math.rsqrt %121 : vector<16x1xf32>
    %123 = vector.broadcast %122 : vector<16x1xf32> to vector<16x32xf32>
    %124 = arith.mulf %119, %123 : vector<16x32xf32>
    %125 = vector.broadcast %21 : vector<1x32xf32> to vector<16x32xf32>
    %126 = arith.mulf %124, %125 : vector<16x32xf32>
    %127 = vector.broadcast %22 : vector<1x32xf32> to vector<16x32xf32>
    %128 = arith.addf %126, %127 : vector<16x32xf32>
    %129 = vector.shape_cast %128 : vector<16x32xf32> to vector<2x8x32xf32>
    %c0_36 = arith.constant 0 : index
    %c0_37 = arith.constant 0 : index
    %c0_38 = arith.constant 0 : index
    %130 = vector.load %arg10[%c0_36, %c0_37, %c0_38] : memref<2x8x32xf32, #tpu.memory_space<vmem>>, vector<2x8x32xf32>
    tpu.vector_store %arg10[%c0_36, %c0_37, %c0_38], %129 {strides = array<i32>} : memref<2x8x32xf32, #tpu.memory_space<vmem>>, vector<2x8x32xf32>,
    return
  }
  func.func @transform_0(%arg0: i32, %arg1: i32) -> (i32, i32, i32) {
    %c0_i32 = arith.constant 0 : i32
    %c0_i32_0 = arith.constant 0 : i32
    %c0_i32_1 = arith.constant 0 : i32
    return %arg0, %c0_i32, %c0_i32_0 : i32, i32, i32
  }
  func.func @transform_1(%arg0: i32, %arg1: i32) -> (i32, i32, i32) {
    %c0_i32 = arith.constant 0 : i32
    %c0_i32_0 = arith.constant 0 : i32
    %c0_i32_1 = arith.constant 0 : i32
    return %arg0, %c0_i32, %c0_i32_0 : i32, i32, i32
  }
  func.func @transform_2(%arg0: i32, %arg1: i32) -> (i32, i32, i32) {
    %c0_i32 = arith.constant 0 : i32
    %c0_i32_0 = arith.constant 0 : i32
    %c0_i32_1 = arith.constant 0 : i32
    %c0_i32_2 = arith.constant 0 : i32
    return %c0_i32, %c0_i32_0, %c0_i32_1 : i32, i32, i32
  }
  func.func @transform_3(%arg0: i32, %arg1: i32) -> (i32, i32, i32) {
    %c0_i32 = arith.constant 0 : i32
    %c0_i32_0 = arith.constant 0 : i32
    %c0_i32_1 = arith.constant 0 : i32
    %c0_i32_2 = arith.constant 0 : i32
    return %c0_i32, %c0_i32_0, %c0_i32_1 : i32, i32, i32
  }
  func.func @transform_4(%arg0: i32, %arg1: i32) -> (i32, i32, i32) {
    %c0_i32 = arith.constant 0 : i32
    %c0_i32_0 = arith.constant 0 : i32
    %c0_i32_1 = arith.constant 0 : i32
    %c0_i32_2 = arith.constant 0 : i32
    return %c0_i32, %c0_i32_0, %c0_i32_1 : i32, i32, i32
  }
  func.func @transform_5(%arg0: i32, %arg1: i32) -> (i32, i32, i32) {
    %c0_i32 = arith.constant 0 : i32
    %c0_i32_0 = arith.constant 0 : i32
    %c0_i32_1 = arith.constant 0 : i32
    %c0_i32_2 = arith.constant 0 : i32
    return %c0_i32, %c0_i32_0, %c0_i32_1 : i32, i32, i32
  }
  func.func @transform_6(%arg0: i32, %arg1: i32) -> (i32, i32, i32) {
    %c0_i32 = arith.constant 0 : i32
    %c0_i32_0 = arith.constant 0 : i32
    %c0_i32_1 = arith.constant 0 : i32
    %c0_i32_2 = arith.constant 0 : i32
    return %c0_i32, %c0_i32_0, %c0_i32_1 : i32, i32, i32
  }
  func.func @transform_7(%arg0: i32, %arg1: i32) -> (i32, i32, i32) {
    %c0_i32 = arith.constant 0 : i32
    %c0_i32_0 = arith.constant 0 : i32
    %c0_i32_1 = arith.constant 0 : i32
    %c0_i32_2 = arith.constant 0 : i32
    return %c0_i32, %c0_i32_0, %c0_i32_1 : i32, i32, i32
  }
  func.func @transform_8(%arg0: i32, %arg1: i32) -> (i32, i32, i32) {
    %c0_i32 = arith.constant 0 : i32
    %c0_i32_0 = arith.constant 0 : i32
    %c0_i32_1 = arith.constant 0 : i32
    return %arg0, %c0_i32, %c0_i32_0 : i32, i32, i32
  }
}

</mosaic_0001>

<llo_original>
// kernel: tpu_custom_call.1
$region0: #{tpu_custom_call.1}
  #allocation0 [shape = 'u32[]', space=smem, size = 0x4, offset = 0x4, fixed_abs, tag = 'smem constant byte address 0x4 - core index']
  #allocation1 [shape = 'u32[144,128]{1,0:T(1,128)}', space=vmem, size = 0x12000, scoped, tag = 'internal scratch']
  %s0 = inlined_call_operand.vmem [shape: f32[4,8,32], index: 0, kind: input, shape index: {}]
  %s1 = inlined_call_operand.vmem [shape: f32[4,1,8], index: 1, kind: input, shape index: {}]
  %s2 = inlined_call_operand.vmem [shape: bf16[2,32,96], index: 2, kind: input, shape index: {}]
  %s3 = inlined_call_operand.vmem [shape: bf16[2,32,32], index: 3, kind: input, shape index: {}]
  %s4 = inlined_call_operand.vmem [shape: bf16[2,32,128], index: 4, kind: input, shape index: {}]
  %s5 = inlined_call_operand.vmem [shape: bf16[2,128,32], index: 5, kind: input, shape index: {}]
  %s6 = inlined_call_operand.vmem [shape: f32[2,6,32], index: 6, kind: input, shape index: {}]
  %s7 = inlined_call_operand.vmem [shape: f32[2,1,128], index: 7, kind: input, shape index: {}]
  %s8 = inlined_call_operand.hbm [shape: f32[4,8,32], index: 8, kind: output, shape index: {}]
  %s9 = sld [smem:[#allocation0]]
  $region69: #{tpu_custom_call.1} parent=0
    _
  %s11 = ssub.s32 1, %s9
  %s12 = scalar_select 0, %s11, %s9
  $region1: #{tpu_custom_call.1} parent=0
    #allocation2 [shape = 'u8[16384]{0}', space=vmem, size = 0x4000, scoped, tag = 'output window, operand 0']
    #allocation3 [shape = 's32[2]{0}', space=sflag, size = 0x8, scoped, tag = 'scoped memory for tpu_custom_call.1']
    %13 = vsyncpa [#allocation3], 0
    %s14 = scalar_lea.sflag [#allocation3], 1
    %15 = vsyncpa %s14, 0
    loop: start=0, step=1, limit=6
    $region2: #{tpu_custom_call.1} parent=1 // loop_pre_header
      _
    $region3: #{tpu_custom_call.1} parent=1 // loop_header
      %s17 = sphi 0, %s21
      %p18 = scmp.ge.s32.totalorder %s17, 6
      %s24 = sphi 0, %s36
      %s25 = sphi 0, %s32
      %s26 = sphi 0, %s24
      %s27 = sphi 0, %s25
      %s28 = sphi 0, %s26
      %s29 = sphi 0, %s27
      %s39 = sphi 0, %s41
      %s42 = sphi 0, %s39
      %s43 = sphi 0, %s42
      %s59 = sphi 0, %s43
      %s65 = sphi 0, %s67
      %s68 = sphi 0, %s65
      %s69 = sphi 0, %s68
      %s85 = sphi 0, %s69
      %s89 = sphi 0, %s89
      %s91 = sphi 0, %s89
      %s92 = sphi 0, %s91
      %s106 = sphi 0, %s92
      %s110 = sphi 0, %s110
      %s112 = sphi 0, %s110
      %s113 = sphi 0, %s112
      %s127 = sphi 0, %s113
      %s131 = sphi 0, %s131
      %s133 = sphi 0, %s131
      %s134 = sphi 0, %s133
      %s148 = sphi 0, %s134
      %s152 = sphi 0, %s152
      %s154 = sphi 0, %s152
      %s155 = sphi 0, %s154
      %s169 = sphi 0, %s155
      %s173 = sphi 0, %s173
      %s175 = sphi 0, %s173
      %s176 = sphi 0, %s175
      %s190 = sphi 0, %s176
      %s194 = sphi 0, %s194
      %s196 = sphi 0, %s194
      %s197 = sphi 0, %s196
      %s211 = sphi 0, %s197
      %s217 = sphi 0, %s219
      %s220 = sphi 0, %s217
      %s221 = sphi 0, %s220
      %s237 = sphi 0, %s221
    $region4: #{tpu_custom_call.1} parent=1 // loop_header_branch
      %20 = sbr.rel (%p18) target = $region8
    $region5: #{tpu_custom_call.1} parent=1 // loop_body
      %s22 = ssub.s32 %s17, 1
      %s23 = ssub.s32 %s17, 2
      %s30 = sadd.s32 1, %s25
      %p31 = scmp.ge.s32.totalorder %s30, 2
      %s32 = scalar_select %p31, 0, %s30
      %s33 = sadd.s32 1, %s24
      %s34 = scalar_select %p31, %s33, %s24
      %p35 = scmp.ge.s32.totalorder %s34, 2
      %s36 = scalar_select %p35, 0, %s34
      %s37 = ssub.s32 %s24, %s36
      %p38 = scmp.eq.s32.totalorder %s37, 0
      %s40 = sadd.s32 %s39, 1
      %s41 = scalar_select %p38, %s39, %s40
      %p44 = pneg %p38
      %p45 = scmp.eq.s32.totalorder %s17, 3
      %p46 = por %p44, %p45
      %p47 = scmp.ne.s32.totalorder %s39, %s42
      %p48 = scmp.eq.s32.totalorder %s17, 0
      %p49 = por %p47, %p48
      %p50 = scmp.ne.s32.totalorder %s39, %s42
      %p51 = scmp.eq.s32.totalorder %s22, 3
      %p52 = por %p50, %p51
      %p53 = scmp.ne.s32.totalorder %s42, %s43
      %p54 = scmp.eq.s32.totalorder %s22, 0
      %p55 = por %p53, %p54
      %p56 = scmp.ne.s32.totalorder %s42, %s43
      %p57 = scmp.eq.s32.totalorder %s23, 3
      %p58 = por %p56, %p57
      %p60 = scmp.ne.s32.totalorder %s43, %s59
      %p61 = scmp.eq.s32.totalorder %s23, 0
      %p62 = por %p60, %p61
      %s63 = ssub.s32 %s24, %s36
      %p64 = scmp.eq.s32.totalorder %s63, 0
      %s66 = sadd.s32 %s65, 1
      %s67 = scalar_select %p64, %s65, %s66
      %p70 = pneg %p64
      %p71 = scmp.eq.s32.totalorder %s17, 3
      %p72 = por %p70, %p71
      %p73 = scmp.ne.s32.totalorder %s65, %s68
      %p74 = scmp.eq.s32.totalorder %s17, 0
      %p75 = por %p73, %p74
      %p76 = scmp.ne.s32.totalorder %s65, %s68
      %p77 = scmp.eq.s32.totalorder %s22, 3
      %p78 = por %p76, %p77
      %p79 = scmp.ne.s32.totalorder %s68, %s69
      %p80 = scmp.eq.s32.totalorder %s22, 0
      %p81 = por %p79, %p80
      %p82 = scmp.ne.s32.totalorder %s68, %s69
      %p83 = scmp.eq.s32.totalorder %s23, 3
      %p84 = por %p82, %p83
      %p86 = scmp.ne.s32.totalorder %s69, %s85
      %p87 = scmp.eq.s32.totalorder %s23, 0
      %p88 = por %p86, %p87
      %s90 = sadd.s32 %s89, 1
      %p93 = scmp.eq.s32.totalorder %s17, 3
      %p94 = scmp.ne.s32.totalorder %s89, %s91
      %p95 = scmp.eq.s32.totalorder %s17, 0
      %p96 = por %p94, %p95
      %p97 = scmp.ne.s32.totalorder %s89, %s91
      %p98 = scmp.eq.s32.totalorder %s22, 3
      %p99 = por %p97, %p98
      %p100 = scmp.ne.s32.totalorder %s91, %s92
      %p101 = scmp.eq.s32.totalorder %s22, 0
      %p102 = por %p100, %p101
      %p103 = scmp.ne.s32.totalorder %s91, %s92
      %p104 = scmp.eq.s32.totalorder %s23, 3
      %p105 = por %p103, %p104
      %p107 = scmp.ne.s32.totalorder %s92, %s106
      %p108 = scmp.eq.s32.totalorder %s23, 0
      %p109 = por %p107, %p108
      %s111 = sadd.s32 %s110, 1
      %p114 = scmp.eq.s32.totalorder %s17, 3
      %p115 = scmp.ne.s32.totalorder %s110, %s112
      %p116 = scmp.eq.s32.totalorder %s17, 0
      %p117 = por %p115, %p116
      %p118 = scmp.ne.s32.totalorder %s110, %s112
      %p119 = scmp.eq.s32.totalorder %s22, 3
      %p120 = por %p118, %p119
      %p121 = scmp.ne.s32.totalorder %s112, %s113
      %p122 = scmp.eq.s32.totalorder %s22, 0
      %p123 = por %p121, %p122
      %p124 = scmp.ne.s32.totalorder %s112, %s113
      %p125 = scmp.eq.s32.totalorder %s23, 3
      %p126 = por %p124, %p125
      %p128 = scmp.ne.s32.totalorder %s113, %s127
      %p129 = scmp.eq.s32.totalorder %s23, 0
      %p130 = por %p128, %p129
      %s132 = sadd.s32 %s131, 1
      %p135 = scmp.eq.s32.totalorder %s17, 3
      %p136 = scmp.ne.s32.totalorder %s131, %s133
      %p137 = scmp.eq.s32.totalorder %s17, 0
      %p138 = por %p136, %p137
      %p139 = scmp.ne.s32.totalorder %s131, %s133
      %p140 = scmp.eq.s32.totalorder %s22, 3
      %p141 = por %p139, %p140
      %p142 = scmp.ne.s32.totalorder %s133, %s134
      %p143 = scmp.eq.s32.totalorder %s22, 0
      %p144 = por %p142, %p143
      %p145 = scmp.ne.s32.totalorder %s133, %s134
      %p146 = scmp.eq.s32.totalorder %s23, 3
      %p147 = por %p145, %p146
      %p149 = scmp.ne.s32.totalorder %s134, %s148
      %p150 = scmp.eq.s32.totalorder %s23, 0
      %p151 = por %p149, %p150
      %s153 = sadd.s32 %s152, 1
      %p156 = scmp.eq.s32.totalorder %s17, 3
      %p157 = scmp.ne.s32.totalorder %s152, %s154
      %p158 = scmp.eq.s32.totalorder %s17, 0
      %p159 = por %p157, %p158
      %p160 = scmp.ne.s32.totalorder %s152, %s154
      %p161 = scmp.eq.s32.totalorder %s22, 3
      %p162 = por %p160, %p161
      %p163 = scmp.ne.s32.totalorder %s154, %s155
      %p164 = scmp.eq.s32.totalorder %s22, 0
      %p165 = por %p163, %p164
      %p166 = scmp.ne.s32.totalorder %s154, %s155
      %p167 = scmp.eq.s32.totalorder %s23, 3
      %p168 = por %p166, %p167
      %p170 = scmp.ne.s32.totalorder %s155, %s169
      %p171 = scmp.eq.s32.totalorder %s23, 0
      %p172 = por %p170, %p171
      %s174 = sadd.s32 %s173, 1
      %p177 = scmp.eq.s32.totalorder %s17, 3
      %p178 = scmp.ne.s32.totalorder %s173, %s175
      %p179 = scmp.eq.s32.totalorder %s17, 0
      %p180 = por %p178, %p179
      %p181 = scmp.ne.s32.totalorder %s173, %s175
      %p182 = scmp.eq.s32.totalorder %s22, 3
      %p183 = por %p181, %p182
      %p184 = scmp.ne.s32.totalorder %s175, %s176
      %p185 = scmp.eq.s32.totalorder %s22, 0
      %p186 = por %p184, %p185
      %p187 = scmp.ne.s32.totalorder %s175, %s176
      %p188 = scmp.eq.s32.totalorder %s23, 3
      %p189 = por %p187, %p188
      %p191 = scmp.ne.s32.totalorder %s176, %s190
      %p192 = scmp.eq.s32.totalorder %s23, 0
      %p193 = por %p191, %p192
      %s195 = sadd.s32 %s194, 1
      %p198 = scmp.eq.s32.totalorder %s17, 3
      %p199 = scmp.ne.s32.totalorder %s194, %s196
      %p200 = scmp.eq.s32.totalorder %s17, 0
      %p201 = por %p199, %p200
      %p202 = scmp.ne.s32.totalorder %s194, %s196
      %p203 = scmp.eq.s32.totalorder %s22, 3
      %p204 = por %p202, %p203
      %p205 = scmp.ne.s32.totalorder %s196, %s197
      %p206 = scmp.eq.s32.totalorder %s22, 0
      %p207 = por %p205, %p206
      %p208 = scmp.ne.s32.totalorder %s196, %s197
      %p209 = scmp.eq.s32.totalorder %s23, 3
      %p210 = por %p208, %p209
      %p212 = scmp.ne.s32.totalorder %s197, %s211
      %p213 = scmp.eq.s32.totalorder %s23, 0
      %p214 = por %p212, %p213
      %s215 = ssub.s32 %s24, %s36
      %p216 = scmp.eq.s32.totalorder %s215, 0
      %s218 = sadd.s32 %s217, 1
      %s219 = scalar_select %p216, %s217, %s218
      %p222 = pneg %p216
      %p223 = scmp.eq.s32.totalorder %s17, 3
      %p224 = por %p222, %p223
      %p225 = scmp.ne.s32.totalorder %s217, %s220
      %p226 = scmp.eq.s32.totalorder %s17, 0
      %p227 = por %p225, %p226
      %p228 = scmp.ne.s32.totalorder %s217, %s220
      %p229 = scmp.eq.s32.totalorder %s22, 3
      %p230 = por %p228, %p229
      %p231 = scmp.ne.s32.totalorder %s220, %s221
      %p232 = scmp.eq.s32.totalorder %s22, 0
      %p233 = por %p231, %p232
      %p234 = scmp.ne.s32.totalorder %s220, %s221
      %p235 = scmp.eq.s32.totalorder %s23, 3
      %p236 = por %p234, %p235
      %p238 = scmp.ne.s32.totalorder %s221, %s237
      %p239 = scmp.eq.s32.totalorder %s23, 0
      %p240 = por %p238, %p239
      %p241 = scmp.le.s32.totalorder 1, %s17
      %p242 = scmp.lt.s32.totalorder %s17, 5
      %p243 = pnand %p241, %p242
      %p244 = pneg %p243
      // Predicated region
      $region9: #{tpu_custom_call.1} parent=5 // pred_check
        _
      $region10: #{tpu_custom_call.1} parent=5 // pred_check_branch
        %246 = sbr.rel (%p243) target = $region12
      $region11: #{tpu_custom_call.1} parent=5 // pred_region
        %s247 = ssub.s32 %s17, 1
        // Predicated region
        $region13: #{tpu_custom_call.1} parent=11 // pred_check
          %p248 = pneg %p102
        $region14: #{tpu_custom_call.1} parent=11 // pred_check_branch
          %250 = sbr.rel (%p248) target = $region16
        $region15: #{tpu_custom_call.1} parent=11 // pred_region
          _
        $region16: #{tpu_custom_call.1} parent=11 // pred_fallthru
          _
        // Predicated region
        $region17: #{tpu_custom_call.1} parent=11 // pred_check
          %p251 = pneg %p123
        $region18: #{tpu_custom_call.1} parent=11 // pred_check_branch
          %253 = sbr.rel (%p251) target = $region20
        $region19: #{tpu_custom_call.1} parent=11 // pred_region
          _
        $region20: #{tpu_custom_call.1} parent=11 // pred_fallthru
          _
        // Predicated region
        $region21: #{tpu_custom_call.1} parent=11 // pred_check
          %p254 = pneg %p144
        $region22: #{tpu_custom_call.1} parent=11 // pred_check_branch
          %256 = sbr.rel (%p254) target = $region24
        $region23: #{tpu_custom_call.1} parent=11 // pred_region
          _
        $region24: #{tpu_custom_call.1} parent=11 // pred_fallthru
          _
        // Predicated region
        $region25: #{tpu_custom_call.1} parent=11 // pred_check
          %p257 = pneg %p165
        $region26: #{tpu_custom_call.1} parent=11 // pred_check_branch
          %259 = sbr.rel (%p257) target = $region28
        $region27: #{tpu_custom_call.1} parent=11 // pred_region
          _
        $region28: #{tpu_custom_call.1} parent=11 // pred_fallthru
          _
        // Predicated region
        $region29: #{tpu_custom_call.1} parent=11 // pred_check
          %p260 = pneg %p186
        $region30: #{tpu_custom_call.1} parent=11 // pred_check_branch
          %262 = sbr.rel (%p260) target = $region32
        $region31: #{tpu_custom_call.1} parent=11 // pred_region
          _
        $region32: #{tpu_custom_call.1} parent=11 // pred_fallthru
          _
        // Predicated region
        $region33: #{tpu_custom_call.1} parent=11 // pred_check
          %p263 = pneg %p207
        $region34: #{tpu_custom_call.1} parent=11 // pred_check_branch
          %265 = sbr.rel (%p263) target = $region36
        $region35: #{tpu_custom_call.1} parent=11 // pred_region
          _
        $region36: #{tpu_custom_call.1} parent=11 // pred_fallthru
          _
      $region12: #{tpu_custom_call.1} parent=5 // pred_fallthru
        _
      %p266 = scmp.lt.s32.totalorder %s17, 4
      // Predicated region
      $region37: #{tpu_custom_call.1} parent=5 // pred_check
        %p267 = pneg %p266
      $region38: #{tpu_custom_call.1} parent=5 // pred_check_branch
        %269 = sbr.rel (%p267) target = $region40
      $region39: #{tpu_custom_call.1} parent=5 // pred_region
        // Predicated region
        $region41: #{tpu_custom_call.1} parent=39 // pred_check
          %p270 = pneg %p49
        $region42: #{tpu_custom_call.1} parent=39 // pred_check_branch
          %272 = sbr.rel (%p270) target = $region44
        $region43: #{tpu_custom_call.1} parent=39 // pred_region
          %s273 = smul.u32 2, %s24
          %p274 = scmp.lt.s32.totalorder %s273, 3
          %s275 = scalar_select %p274, %s273, 3
          %s276 = smul.addr %s275, 8
          %s277 = scalar_lea.vmem %s0, %s276
          %s278 = smul.u32 2, %s24
        $region44: #{tpu_custom_call.1} parent=39 // pred_fallthru
          _
        // Predicated region
        $region45: #{tpu_custom_call.1} parent=39 // pred_check
          %p279 = pneg %p75
        $region46: #{tpu_custom_call.1} parent=39 // pred_check_branch
          %281 = sbr.rel (%p279) target = $region48
        $region47: #{tpu_custom_call.1} parent=39 // pred_region
          %s282 = smul.u32 2, %s24
          %p283 = scmp.lt.s32.totalorder %s282, 3
          %s284 = scalar_select %p283, %s282, 3
          %s285 = scalar_lea.vmem %s1, %s284
          %s286 = smul.u32 2, %s24
        $region48: #{tpu_custom_call.1} parent=39 // pred_fallthru
          _
      $region40: #{tpu_custom_call.1} parent=5 // pred_fallthru
        _
      %p287 = scmp.le.s32.totalorder 1, %s17
      %p288 = scmp.lt.s32.totalorder %s17, 5
      %p289 = pnand %p287, %p288
      %p290 = pneg %p289
      // Predicated region
      $region49: #{tpu_custom_call.1} parent=5 // pred_check
        _
      $region50: #{tpu_custom_call.1} parent=5 // pred_check_branch
        %292 = sbr.rel (%p289) target = $region52
      $region51: #{tpu_custom_call.1} parent=5 // pred_region
        %s293 = ssub.s32 %s17, 1
        %s294 = smul.u32 2, %s26
        %p295 = scmp.lt.s32.totalorder %s294, 3
        %s296 = scalar_select %p295, %s294, 3
        %s297 = smul.addr %s296, 8
        %s298 = scalar_lea.vmem %s0, %s297
        %p299 = pneg %p55
        %p300 = pneg %p52
        %s301 = smul.u32 2, %s26
        %p302 = scmp.lt.s32.totalorder %s301, 3
        %s303 = scalar_select %p302, %s301, 3
        %s304 = scalar_lea.vmem %s1, %s303
        %p305 = pneg %p81
        %p306 = pneg %p78
        %p307 = pneg %p102
        %p308 = pneg %p99
        %p309 = pneg %p123
        %p310 = pneg %p120
        %p311 = pneg %p144
        %p312 = pneg %p141
        %p313 = pneg %p165
        %p314 = pneg %p162
        %p315 = pneg %p186
        %p316 = pneg %p183
        %p317 = pneg %p207
        %p318 = pneg %p204
        %p319 = pneg %p233
        %p320 = pneg %p230
        %s321 = sand.u32 %s220, 1
        %s322 = scalar_lea.sflag [#allocation3], %s321
        %s323 = sand.u32 %s220, 1
        %s324 = smul.addr %s323, 16
        %s325 = scalar_lea.vmem [#allocation2], %s324
        %s326 = smul.u32 2, %s26
        %p327 = scmp.lt.s32.totalorder %s326, 3
        %s328 = scalar_select %p327, %s326, 3
        %s329 = smul.addr %s328, 8
        %s330 = scalar_lea.vmem %s0, %s329
        %s331 = smul.u32 2, %s26
        %s332 = smul.u32 2, %s26
        %p333 = scmp.lt.s32.totalorder %s332, 3
        %s334 = scalar_select %p333, %s332, 3
        %s335 = scalar_lea.vmem %s1, %s334
        %s336 = smul.u32 2, %s26
        %s337 = smul.u32 2, %s26
        %p339 = scmp.eq.s32.totalorder %s27, 0
        // Predicated region
        $region53: #{tpu_custom_call.1} parent=51 // pred_check
          %p340 = pneg %p339
        $region54: #{tpu_custom_call.1} parent=51 // pred_check_branch
          %342 = sbr.rel (%p340) target = $region56
        $region55: #{tpu_custom_call.1} parent=51 // pred_region
          %v343 = vld [vmem:[%s330] sm:$0xff]
          %v344 = vld [vmem:[%s330 + $0x8] sm:$0xff]
          %vm345 = vcmask 261120
          %346 = vst.msk [vmem:[%s325] sm:$0xff] %vm345, %v343
          %347 = vst.msk [vmem:[%s325 + $0x8] sm:$0xff] %vm345, %v344
        $region56: #{tpu_custom_call.1} parent=51 // pred_fallthru
          _
        %s348 = smul.u32 %s27, 4
        %s349 = smul.addr %s348, 4
        %s350 = scalar_lea.vmem %s2, %s349
        %v351 = vld [vmem:[%s350] sm:$0xf]
        %v352 = vld [vmem:[%s350 + $0x4] sm:$0xf]
        %v353 = vld [vmem:[%s350 + $0x8] sm:$0xf]
        %v354 = vld [vmem:[%s350 + $0xc] sm:$0xf]
        %s355 = smul.addr %s348, 4
        %s356 = scalar_lea.vmem %s3, %s355
        %v357 = vld [vmem:[%s356] sm:$0xf]
        %v358 = vld [vmem:[%s356 + $0x4] sm:$0xf]
        %v359 = vld [vmem:[%s356 + $0x8] sm:$0xf]
        %v360 = vld [vmem:[%s356 + $0xc] sm:$0xf]
        %s361 = smul.addr %s348, 4
        %s362 = scalar_lea.vmem %s4, %s361
        %v363 = vld [vmem:[%s362] sm:$0xf]
        %v364 = vld [vmem:[%s362 + $0x4] sm:$0xf]
        %v365 = vld [vmem:[%s362 + $0x8] sm:$0xf]
        %v366 = vld [vmem:[%s362 + $0xc] sm:$0xf]
        %s367 = smul.u32 %s27, 16
        %s368 = smul.addr %s367, 4
        %s369 = scalar_lea.vmem %s5, %s368
        %v370 = vld [vmem:[%s369] sm:$0xf]
        %v371 = vld [vmem:[%s369 + $0x4] sm:$0xf]
        %v372 = vld [vmem:[%s369 + $0x8] sm:$0xf]
        %v373 = vld [vmem:[%s369 + $0xc] sm:$0xf]
        %v374 = vld [vmem:[%s369 + $0x10] sm:$0xf]
        %v375 = vld [vmem:[%s369 + $0x14] sm:$0xf]
        %v376 = vld [vmem:[%s369 + $0x18] sm:$0xf]
        %v377 = vld [vmem:[%s369 + $0x1c] sm:$0xf]
        %v378 = vld [vmem:[%s369 + $0x20] sm:$0xf]
        %v379 = vld [vmem:[%s369 + $0x24] sm:$0xf]
        %v380 = vld [vmem:[%s369 + $0x28] sm:$0xf]
        %v381 = vld [vmem:[%s369 + $0x2c] sm:$0xf]
        %v382 = vld [vmem:[%s369 + $0x30] sm:$0xf]
        %v383 = vld [vmem:[%s369 + $0x34] sm:$0xf]
        %v384 = vld [vmem:[%s369 + $0x38] sm:$0xf]
        %v385 = vld [vmem:[%s369 + $0x3c] sm:$0xf]
        %s386 = smul.u32 %s27, 8
        %s387 = scalar_lea.vmem %s6, %s386
        %v388 = vld [vmem:[%s387] sm:$0x3f]
        %s389 = scalar_lea.vmem %s7, %s27
        %v390 = vld [vmem:[%s389] sm:$0x1]
        %v391 = vld [vmem:[%s325] sm:$0xff]
        %v392 = vld [vmem:[%s325 + $0x8] sm:$0xff]
        %v393 = vpack.c.bf16 %v392, %v391
        %v398 = vunpack.c.l.b16 %v351
        %v399 = vunpack.c.l.b16 %v352
        %v400 = vunpack.c.l.b16 %v353
        %v401 = vunpack.c.l.b16 %v354
        %v402 = vpack.c.b16 %v399, %v398
        %v403 = vpack.c.b16 %v401, %v400
        %vm406 = vcmask 261120
        %v408 = vsel %vm406, %v393, 0
        %410 = vmatprep.subr.bf16.mxu0 0
        %411 = vmatpush1.bf16.msra.mxu0 %v402
        %412 = vmatprep.subr.bf16.mxu0 0
        %413 = vmatpush1.bf16.msra.mxu0 %v403
        %414 = vmatprep.subr.bf16.mxu0 0
        %415 = vmatpush1.bf16.msra.mxu0 0
        %416 = vmatprep.subr.bf16.mxu0 0
        %417 = vmatpush1.bf16.msra.mxu0 0
        %418 = vmatprep.subr.bf16.mxu0 0
        %419 = vmatpush1.bf16.msra.mxu0 0
        %420 = vmatprep.subr.bf16.mxu0 0
        %421 = vmatpush1.bf16.msra.mxu0 0
        %422 = vmatprep.subr.bf16.mxu0 0
        %423 = vmatpush1.bf16.msra.mxu0 0
        %424 = vmatprep.subr.bf16.mxu0 0
        %425 = vmatpush1.bf16.msra.mxu0 0
        %426 = vmatprep.subr.bf16.mxu0 0
        %427 = vmatpush1.bf16.msra.mxu0 0
        %428 = vmatprep.subr.bf16.mxu0 0
        %429 = vmatpush1.bf16.msra.mxu0 0
        %430 = vmatprep.subr.bf16.mxu0 0
        %431 = vmatpush1.bf16.msra.mxu0 0
        %432 = vmatprep.subr.bf16.mxu0 0
        %433 = vmatpush1.bf16.msra.mxu0 0
        %434 = vmatprep.subr.bf16.mxu0 0
        %435 = vmatpush1.bf16.msra.mxu0 0
        %436 = vmatprep.subr.bf16.mxu0 0
        %437 = vmatpush1.bf16.msra.mxu0 0
        %438 = vmatprep.subr.bf16.mxu0 0
        %439 = vmatpush1.bf16.msra.mxu0 0
        %440 = vmatprep.subr.bf16.mxu0 0
        %441 = vmatpush1.bf16.msra.mxu0 0
        %442 = vmatprep.mubr.bf16.mxu0 0
        %443 = vmatmul.mubr.bf16.gmra.mrb[0].mxu0 %v408
        %v444 = vpop.f32.mrb[0].mxu0
        %v445 = vadd.f32 0.0, %v444
        %v446 = vpop.f32.mrb[0].mxu0
        %v447 = vpop.f32.mrb[0].mxu0
        %v448 = vadd.f32 0.0, %v447
        %v449 = vpop.f32.mrb[0].mxu0
        %450 = vdwg.mxu0
        %451 = vxpose.xlu0.b32.start [1/16] %v445, 128
        %452 = vxpose.xlu0.b32.cont [2/16] 0.0, 128
        %453 = vxpose.xlu0.b32.cont [3/16] 0.0, 128
        %454 = vxpose.xlu0.b32.cont [4/16] 0.0, 128
        %455 = vxpose.xlu0.b32.cont [5/16] 0.0, 128
        %456 = vxpose.xlu0.b32.cont [6/16] 0.0, 128
        %457 = vxpose.xlu0.b32.cont [7/16] 0.0, 128
        %458 = vxpose.xlu0.b32.cont [8/16] 0.0, 128
        %459 = vxpose.xlu0.b32.cont [9/16] 0.0, 128
        %460 = vxpose.xlu0.b32.cont [10/16] 0.0, 128
        %461 = vxpose.xlu0.b32.cont [11/16] 0.0, 128
        %462 = vxpose.xlu0.b32.cont [12/16] 0.0, 128
        %463 = vxpose.xlu0.b32.cont [13/16] 0.0, 128
        %464 = vxpose.xlu0.b32.cont [14/16] 0.0, 128
        %465 = vxpose.xlu0.b32.cont [15/16] 0.0, 128
        %466 = vxpose.xlu0.b32.end [16/16] 0.0, 128
        %v467 = vpop.trf.xlu0
        %v468 = vpop.trf.xlu0
        %v469 = vpop.trf.xlu0
        %v470 = vpop.trf.xlu0
        %v471 = vpop.trf.xlu0
        %v472 = vpop.trf.xlu0
        %v473 = vpop.trf.xlu0
        %v474 = vpop.trf.xlu0
        %v475 = vpop.trf.xlu0
        %v476 = vpop.trf.xlu0
        %v477 = vpop.trf.xlu0
        %v478 = vpop.trf.xlu0
        %v479 = vpop.trf.xlu0
        %v480 = vpop.trf.xlu0
        %v481 = vpop.trf.xlu0
        %v482 = vpop.trf.xlu0
        %483 = vxpose.xlu0.b32.start [1/16] %v448, 128
        %484 = vxpose.xlu0.b32.cont [2/16] 0.0, 128
        %485 = vxpose.xlu0.b32.cont [3/16] 0.0, 128
        %486 = vxpose.xlu0.b32.cont [4/16] 0.0, 128
        %487 = vxpose.xlu0.b32.cont [5/16] 0.0, 128
        %488 = vxpose.xlu0.b32.cont [6/16] 0.0, 128
        %489 = vxpose.xlu0.b32.cont [7/16] 0.0, 128
        %490 = vxpose.xlu0.b32.cont [8/16] 0.0, 128
        %491 = vxpose.xlu0.b32.cont [9/16] 0.0, 128
        %492 = vxpose.xlu0.b32.cont [10/16] 0.0, 128
        %493 = vxpose.xlu0.b32.cont [11/16] 0.0, 128
        %494 = vxpose.xlu0.b32.cont [12/16] 0.0, 128
        %495 = vxpose.xlu0.b32.cont [13/16] 0.0, 128
        %496 = vxpose.xlu0.b32.cont [14/16] 0.0, 128
        %497 = vxpose.xlu0.b32.cont [15/16] 0.0, 128
        %498 = vxpose.xlu0.b32.end [16/16] 0.0, 128
        %v499 = vpop.trf.xlu0
        %v500 = vpop.trf.xlu0
        %v501 = vpop.trf.xlu0
        %v502 = vpop.trf.xlu0
        %v503 = vpop.trf.xlu0
        %v504 = vpop.trf.xlu0
        %v505 = vpop.trf.xlu0
        %v506 = vpop.trf.xlu0
        %v507 = vpop.trf.xlu0
        %v508 = vpop.trf.xlu0
        %v509 = vpop.trf.xlu0
        %v510 = vpop.trf.xlu0
        %v511 = vpop.trf.xlu0
        %v512 = vpop.trf.xlu0
        %v513 = vpop.trf.xlu0
        %v514 = vpop.trf.xlu0
        %515 = vxpose.xlu0.b32.start [1/16] %v467, 128
        %516 = vxpose.xlu0.b32.cont [2/16] 0.0, 128
        %517 = vxpose.xlu0.b32.cont [3/16] 0.0, 128
        %518 = vxpose.xlu0.b32.cont [4/16] 0.0, 128
        %519 = vxpose.xlu0.b32.cont [5/16] 0.0, 128
        %520 = vxpose.xlu0.b32.cont [6/16] 0.0, 128
        %521 = vxpose.xlu0.b32.cont [7/16] 0.0, 128
        %522 = vxpose.xlu0.b32.cont [8/16] 0.0, 128
        %523 = vxpose.xlu0.b32.cont [9/16] 0.0, 128
        %524 = vxpose.xlu0.b32.cont [10/16] 0.0, 128
        %525 = vxpose.xlu0.b32.cont [11/16] 0.0, 128
        %526 = vxpose.xlu0.b32.cont [12/16] 0.0, 128
        %527 = vxpose.xlu0.b32.cont [13/16] 0.0, 128
        %528 = vxpose.xlu0.b32.cont [14/16] 0.0, 128
        %529 = vxpose.xlu0.b32.cont [15/16] 0.0, 128
        %530 = vxpose.xlu0.b32.end [16/16] 0.0, 128
        %v531 = vpop.trf.xlu0
        %v532 = vpop.trf.xlu0
        %v533 = vpop.trf.xlu0
        %v534 = vpop.trf.xlu0
        %v535 = vpop.trf.xlu0
        %v536 = vpop.trf.xlu0
        %v537 = vpop.trf.xlu0
        %v538 = vpop.trf.xlu0
        %v539 = vpop.trf.xlu0
        %v540 = vpop.trf.xlu0
        %v541 = vpop.trf.xlu0
        %v542 = vpop.trf.xlu0
        %v543 = vpop.trf.xlu0
        %v544 = vpop.trf.xlu0
        %v545 = vpop.trf.xlu0
        %v546 = vpop.trf.xlu0
        %547 = vxpose.xlu0.b32.start [1/16] %v468, 128
        %548 = vxpose.xlu0.b32.cont [2/16] 0.0, 128
        %549 = vxpose.xlu0.b32.cont [3/16] 0.0, 128
        %550 = vxpose.xlu0.b32.cont [4/16] 0.0, 128
        %551 = vxpose.xlu0.b32.cont [5/16] 0.0, 128
        %552 = vxpose.xlu0.b32.cont [6/16] 0.0, 128
        %553 = vxpose.xlu0.b32.cont [7/16] 0.0, 128
        %554 = vxpose.xlu0.b32.cont [8/16] 0.0, 128
        %555 = vxpose.xlu0.b32.cont [9/16] 0.0, 128
        %556 = vxpose.xlu0.b32.cont [10/16] 0.0, 128
        %557 = vxpose.xlu0.b32.cont [11/16] 0.0, 128
        %558 = vxpose.xlu0.b32.cont [12/16] 0.0, 128
        %559 = vxpose.xlu0.b32.cont [13/16] 0.0, 128
        %560 = vxpose.xlu0.b32.cont [14/16] 0.0, 128
        %561 = vxpose.xlu0.b32.cont [15/16] 0.0, 128
        %562 = vxpose.xlu0.b32.end [16/16] 0.0, 128
        %v563 = vpop.trf.xlu0
        %v564 = vpop.trf.xlu0
        %v565 = vpop.trf.xlu0
        %v566 = vpop.trf.xlu0
        %v567 = vpop.trf.xlu0
        %v568 = vpop.trf.xlu0
        %v569 = vpop.trf.xlu0
        %v570 = vpop.trf.xlu0
        %v571 = vpop.trf.xlu0
        %v572 = vpop.trf.xlu0
        %v573 = vpop.trf.xlu0
        %v574 = vpop.trf.xlu0
        %v575 = vpop.trf.xlu0
        %v576 = vpop.trf.xlu0
        %v577 = vpop.trf.xlu0
        %v578 = vpop.trf.xlu0
        %579 = vxpose.xlu0.b32.start [1/16] %v469, 128
        %580 = vxpose.xlu0.b32.cont [2/16] 0.0, 128
        %581 = vxpose.xlu0.b32.cont [3/16] 0.0, 128
        %582 = vxpose.xlu0.b32.cont [4/16] 0.0, 128
        %583 = vxpose.xlu0.b32.cont [5/16] 0.0, 128
        %584 = vxpose.xlu0.b32.cont [6/16] 0.0, 128
        %585 = vxpose.xlu0.b32.cont [7/16] 0.0, 128
        %586 = vxpose.xlu0.b32.cont [8/16] 0.0, 128
        %587 = vxpose.xlu0.b32.cont [9/16] 0.0, 128
        %588 = vxpose.xlu0.b32.cont [10/16] 0.0, 128
        %589 = vxpose.xlu0.b32.cont [11/16] 0.0, 128
        %590 = vxpose.xlu0.b32.cont [12/16] 0.0, 128
        %591 = vxpose.xlu0.b32.cont [13/16] 0.0, 128
        %592 = vxpose.xlu0.b32.cont [14/16] 0.0, 128
        %593 = vxpose.xlu0.b32.cont [15/16] 0.0, 128
        %594 = vxpose.xlu0.b32.end [16/16] 0.0, 128
        %v595 = vpop.trf.xlu0
        %v596 = vpop.trf.xlu0
        %v597 = vpop.trf.xlu0
        %v598 = vpop.trf.xlu0
        %v599 = vpop.trf.xlu0
        %v600 = vpop.trf.xlu0
        %v601 = vpop.trf.xlu0
        %v602 = vpop.trf.xlu0
        %v603 = vpop.trf.xlu0
        %v604 = vpop.trf.xlu0
        %v605 = vpop.trf.xlu0
        %v606 = vpop.trf.xlu0
        %v607 = vpop.trf.xlu0
        %v608 = vpop.trf.xlu0
        %v609 = vpop.trf.xlu0
        %v610 = vpop.trf.xlu0
        %611 = vxpose.xlu0.b32.start [1/16] %v470, 128
        %612 = vxpose.xlu0.b32.cont [2/16] 0.0, 128
        %613 = vxpose.xlu0.b32.cont [3/16] 0.0, 128
        %614 = vxpose.xlu0.b32.cont [4/16] 0.0, 128
        %615 = vxpose.xlu0.b32.cont [5/16] 0.0, 128
        %616 = vxpose.xlu0.b32.cont [6/16] 0.0, 128
        %617 = vxpose.xlu0.b32.cont [7/16] 0.0, 128
        %618 = vxpose.xlu0.b32.cont [8/16] 0.0, 128
        %619 = vxpose.xlu0.b32.cont [9/16] 0.0, 128
        %620 = vxpose.xlu0.b32.cont [10/16] 0.0, 128
        %621 = vxpose.xlu0.b32.cont [11/16] 0.0, 128
        %622 = vxpose.xlu0.b32.cont [12/16] 0.0, 128
        %623 = vxpose.xlu0.b32.cont [13/16] 0.0, 128
        %624 = vxpose.xlu0.b32.cont [14/16] 0.0, 128
        %625 = vxpose.xlu0.b32.cont [15/16] 0.0, 128
        %626 = vxpose.xlu0.b32.end [16/16] 0.0, 128
        %v627 = vpop.trf.xlu0
        %v628 = vpop.trf.xlu0
        %v629 = vpop.trf.xlu0
        %v630 = vpop.trf.xlu0
        %v631 = vpop.trf.xlu0
        %v632 = vpop.trf.xlu0
        %v633 = vpop.trf.xlu0
        %v634 = vpop.trf.xlu0
        %v635 = vpop.trf.xlu0
        %v636 = vpop.trf.xlu0
        %v637 = vpop.trf.xlu0
        %v638 = vpop.trf.xlu0
        %v639 = vpop.trf.xlu0
        %v640 = vpop.trf.xlu0
        %v641 = vpop.trf.xlu0
        %v642 = vpop.trf.xlu0
        %643 = vxpose.xlu0.b32.start [1/16] %v499, 128
        %644 = vxpose.xlu0.b32.cont [2/16] 0.0, 128
        %645 = vxpose.xlu0.b32.cont [3/16] 0.0, 128
        %646 = vxpose.xlu0.b32.cont [4/16] 0.0, 128
        %647 = vxpose.xlu0.b32.cont [5/16] 0.0, 128
        %648 = vxpose.xlu0.b32.cont [6/16] 0.0, 128
        %649 = vxpose.xlu0.b32.cont [7/16] 0.0, 128
        %650 = vxpose.xlu0.b32.cont [8/16] 0.0, 128
        %651 = vxpose.xlu0.b32.cont [9/16] 0.0, 128
        %652 = vxpose.xlu0.b32.cont [10/16] 0.0, 128
        %653 = vxpose.xlu0.b32.cont [11/16] 0.0, 128
        %654 = vxpose.xlu0.b32.cont [12/16] 0.0, 128
        %655 = vxpose.xlu0.b32.cont [13/16] 0.0, 128
        %656 = vxpose.xlu0.b32.cont [14/16] 0.0, 128
        %657 = vxpose.xlu0.b32.cont [15/16] 0.0, 128
        %658 = vxpose.xlu0.b32.end [16/16] 0.0, 128
        %v659 = vpop.trf.xlu0
        %v660 = vpop.trf.xlu0
        %v661 = vpop.trf.xlu0
        %v662 = vpop.trf.xlu0
        %v663 = vpop.trf.xlu0
        %v664 = vpop.trf.xlu0
        %v665 = vpop.trf.xlu0
        %v666 = vpop.trf.xlu0
        %v667 = vpop.trf.xlu0
        %v668 = vpop.trf.xlu0
        %v669 = vpop.trf.xlu0
        %v670 = vpop.trf.xlu0
        %v671 = vpop.trf.xlu0
        %v672 = vpop.trf.xlu0
        %v673 = vpop.trf.xlu0
        %v674 = vpop.trf.xlu0
        %675 = vxpose.xlu0.b32.start [1/16] %v500, 128
        %676 = vxpose.xlu0.b32.cont [2/16] 0.0, 128
        %677 = vxpose.xlu0.b32.cont [3/16] 0.0, 128
        %678 = vxpose.xlu0.b32.cont [4/16] 0.0, 128
        %679 = vxpose.xlu0.b32.cont [5/16] 0.0, 128
        %680 = vxpose.xlu0.b32.cont [6/16] 0.0, 128
        %681 = vxpose.xlu0.b32.cont [7/16] 0.0, 128
        %682 = vxpose.xlu0.b32.cont [8/16] 0.0, 128
        %683 = vxpose.xlu0.b32.cont [9/16] 0.0, 128
        %684 = vxpose.xlu0.b32.cont [10/16] 0.0, 128
        %685 = vxpose.xlu0.b32.cont [11/16] 0.0, 128
        %686 = vxpose.xlu0.b32.cont [12/16] 0.0, 128
        %687 = vxpose.xlu0.b32.cont [13/16] 0.0, 128
        %688 = vxpose.xlu0.b32.cont [14/16] 0.0, 128
        %689 = vxpose.xlu0.b32.cont [15/16] 0.0, 128
        %690 = vxpose.xlu0.b32.end [16/16] 0.0, 128
        %v691 = vpop.trf.xlu0
        %v692 = vpop.trf.xlu0
        %v693 = vpop.trf.xlu0
        %v694 = vpop.trf.xlu0
        %v695 = vpop.trf.xlu0
        %v696 = vpop.trf.xlu0
        %v697 = vpop.trf.xlu0
        %v698 = vpop.trf.xlu0
        %v699 = vpop.trf.xlu0
        %v700 = vpop.trf.xlu0
        %v701 = vpop.trf.xlu0
        %v702 = vpop.trf.xlu0
        %v703 = vpop.trf.xlu0
        %v704 = vpop.trf.xlu0
        %v705 = vpop.trf.xlu0
        %v706 = vpop.trf.xlu0
        %707 = vxpose.xlu0.b32.start [1/16] %v501, 128
        %708 = vxpose.xlu0.b32.cont [2/16] 0.0, 128
        %709 = vxpose.xlu0.b32.cont [3/16] 0.0, 128
        %710 = vxpose.xlu0.b32.cont [4/16] 0.0, 128
        %711 = vxpose.xlu0.b32.cont [5/16] 0.0, 128
        %712 = vxpose.xlu0.b32.cont [6/16] 0.0, 128
        %713 = vxpose.xlu0.b32.cont [7/16] 0.0, 128
        %714 = vxpose.xlu0.b32.cont [8/16] 0.0, 128
        %715 = vxpose.xlu0.b32.cont [9/16] 0.0, 128
        %716 = vxpose.xlu0.b32.cont [10/16] 0.0, 128
        %717 = vxpose.xlu0.b32.cont [11/16] 0.0, 128
        %718 = vxpose.xlu0.b32.cont [12/16] 0.0, 128
        %719 = vxpose.xlu0.b32.cont [13/16] 0.0, 128
        %720 = vxpose.xlu0.b32.cont [14/16] 0.0, 128
        %721 = vxpose.xlu0.b32.cont [15/16] 0.0, 128
        %722 = vxpose.xlu0.b32.end [16/16] 0.0, 128
        %v723 = vpop.trf.xlu0
        %v724 = vpop.trf.xlu0
        %v725 = vpop.trf.xlu0
        %v726 = vpop.trf.xlu0
        %v727 = vpop.trf.xlu0
        %v728 = vpop.trf.xlu0
        %v729 = vpop.trf.xlu0
        %v730 = vpop.trf.xlu0
        %v731 = vpop.trf.xlu0
        %v732 = vpop.trf.xlu0
        %v733 = vpop.trf.xlu0
        %v734 = vpop.trf.xlu0
        %v735 = vpop.trf.xlu0
        %v736 = vpop.trf.xlu0
        %v737 = vpop.trf.xlu0
        %v738 = vpop.trf.xlu0
        %739 = vxpose.xlu0.b32.start [1/16] %v502, 128
        %740 = vxpose.xlu0.b32.cont [2/16] 0.0, 128
        %741 = vxpose.xlu0.b32.cont [3/16] 0.0, 128
        %742 = vxpose.xlu0.b32.cont [4/16] 0.0, 128
        %743 = vxpose.xlu0.b32.cont [5/16] 0.0, 128
        %744 = vxpose.xlu0.b32.cont [6/16] 0.0, 128
        %745 = vxpose.xlu0.b32.cont [7/16] 0.0, 128
        %746 = vxpose.xlu0.b32.cont [8/16] 0.0, 128
        %747 = vxpose.xlu0.b32.cont [9/16] 0.0, 128
        %748 = vxpose.xlu0.b32.cont [10/16] 0.0, 128
        %749 = vxpose.xlu0.b32.cont [11/16] 0.0, 128
        %750 = vxpose.xlu0.b32.cont [12/16] 0.0, 128
        %751 = vxpose.xlu0.b32.cont [13/16] 0.0, 128
        %752 = vxpose.xlu0.b32.cont [14/16] 0.0, 128
        %753 = vxpose.xlu0.b32.cont [15/16] 0.0, 128
        %754 = vxpose.xlu0.b32.end [16/16] 0.0, 128
        %v755 = vpop.trf.xlu0
        %v756 = vpop.trf.xlu0
        %v757 = vpop.trf.xlu0
        %v758 = vpop.trf.xlu0
        %v759 = vpop.trf.xlu0
        %v760 = vpop.trf.xlu0
        %v761 = vpop.trf.xlu0
        %v762 = vpop.trf.xlu0
        %v763 = vpop.trf.xlu0
        %v764 = vpop.trf.xlu0
        %v765 = vpop.trf.xlu0
        %v766 = vpop.trf.xlu0
        %v767 = vpop.trf.xlu0
        %v768 = vpop.trf.xlu0
        %v769 = vpop.trf.xlu0
        %v770 = vpop.trf.xlu0
        %v771 = vpack.c.bf16 %v531, %v531
        %v772 = vpack.c.bf16 %v563, %v563
        %v773 = vpack.c.bf16 %v595, %v595
        %v774 = vpack.c.bf16 %v627, %v627
        %v775 = vpack.c.bf16 %v659, %v659
        %v776 = vpack.c.bf16 %v691, %v691
        %v777 = vpack.c.bf16 %v723, %v723
        %v778 = vpack.c.bf16 %v755, %v755
        %v779 = vpack.c.bf16 %v471, %v471
        %v780 = vpack.c.bf16 %v472, %v472
        %v781 = vpack.c.bf16 %v473, %v473
        %v782 = vpack.c.bf16 %v474, %v474
        %v783 = vpack.c.bf16 %v503, %v503
        %v784 = vpack.c.bf16 %v504, %v504
        %v785 = vpack.c.bf16 %v505, %v505
        %v786 = vpack.c.bf16 %v506, %v506
        %vm787 = vcmask 64512
        %v789 = vsel %vm787, %v771, 0
        %vm791 = vcmask 1043456
        %v793 = vsel %vm791, %v779, 0
        %795 = vmatprep.subr.bf16.mxu0 0
        %796 = vmatpush1.bf16.msra.mxu0 %v793
        %797 = vmatprep.subr.bf16.mxu0 0
        %798 = vmatpush1.bf16.msra.mxu0 0
        %799 = vmatprep.subr.bf16.mxu0 0
        %800 = vmatpush1.bf16.msra.mxu0 0
        %801 = vmatprep.subr.bf16.mxu0 0
        %802 = vmatpush1.bf16.msra.mxu0 0
        %803 = vmatprep.subr.bf16.mxu0 0
        %804 = vmatpush1.bf16.msra.mxu0 0
        %805 = vmatprep.subr.bf16.mxu0 0
        %806 = vmatpush1.bf16.msra.mxu0 0
        %807 = vmatprep.subr.bf16.mxu0 0
        %808 = vmatpush1.bf16.msra.mxu0 0
        %809 = vmatprep.subr.bf16.mxu0 0
        %810 = vmatpush1.bf16.msra.mxu0 0
        %811 = vmatprep.subr.bf16.mxu0 0
        %812 = vmatpush1.bf16.msra.mxu0 0
        %813 = vmatprep.subr.bf16.mxu0 0
        %814 = vmatpush1.bf16.msra.mxu0 0
        %815 = vmatprep.subr.bf16.mxu0 0
        %816 = vmatpush1.bf16.msra.mxu0 0
        %817 = vmatprep.subr.bf16.mxu0 0
        %818 = vmatpush1.bf16.msra.mxu0 0
        %819 = vmatprep.subr.bf16.mxu0 0
        %820 = vmatpush1.bf16.msra.mxu0 0
        %821 = vmatprep.subr.bf16.mxu0 0
        %822 = vmatpush1.bf16.msra.mxu0 0
        %823 = vmatprep.subr.bf16.mxu0 0
        %824 = vmatpush1.bf16.msra.mxu0 0
        %825 = vmatprep.subr.bf16.mxu0 0
        %826 = vmatpush1.bf16.msra.mxu0 0
        %827 = vmatprep.mubr.bf16.mxu0 0
        %828 = vmatmul.mubr.bf16.gmra.mrb[0].mxu0 %v789
        %v829 = vpop.f32.mrb[0].mxu0
        %v830 = vadd.f32 0.0, %v829
        %v831 = vpop.f32.mrb[0].mxu0
        %v832 = vpop.f32.mrb[0].mxu0
        %v833 = vpop.f32.mrb[0].mxu0
        %834 = vdwg.mxu0
        %v836 = vsel %vm787, %v772, 0
        %v839 = vsel %vm791, %v780, 0
        %841 = vmatprep.subr.bf16.mxu0 0
        %842 = vmatpush1.bf16.msra.mxu0 %v839
        %843 = vmatprep.subr.bf16.mxu0 0
        %844 = vmatpush1.bf16.msra.mxu0 0
        %845 = vmatprep.subr.bf16.mxu0 0
        %846 = vmatpush1.bf16.msra.mxu0 0
        %847 = vmatprep.subr.bf16.mxu0 0
        %848 = vmatpush1.bf16.msra.mxu0 0
        %849 = vmatprep.subr.bf16.mxu0 0
        %850 = vmatpush1.bf16.msra.mxu0 0
        %851 = vmatprep.subr.bf16.mxu0 0
        %852 = vmatpush1.bf16.msra.mxu0 0
        %853 = vmatprep.subr.bf16.mxu0 0
        %854 = vmatpush1.bf16.msra.mxu0 0
        %855 = vmatprep.subr.bf16.mxu0 0
        %856 = vmatpush1.bf16.msra.mxu0 0
        %857 = vmatprep.subr.bf16.mxu0 0
        %858 = vmatpush1.bf16.msra.mxu0 0
        %859 = vmatprep.subr.bf16.mxu0 0
        %860 = vmatpush1.bf16.msra.mxu0 0
        %861 = vmatprep.subr.bf16.mxu0 0
        %862 = vmatpush1.bf16.msra.mxu0 0
        %863 = vmatprep.subr.bf16.mxu0 0
        %864 = vmatpush1.bf16.msra.mxu0 0
        %865 = vmatprep.subr.bf16.mxu0 0
        %866 = vmatpush1.bf16.msra.mxu0 0
        %867 = vmatprep.subr.bf16.mxu0 0
        %868 = vmatpush1.bf16.msra.mxu0 0
        %869 = vmatprep.subr.bf16.mxu0 0
        %870 = vmatpush1.bf16.msra.mxu0 0
        %871 = vmatprep.subr.bf16.mxu0 0
        %872 = vmatpush1.bf16.msra.mxu0 0
        %873 = vmatprep.mubr.bf16.mxu0 0
        %874 = vmatmul.mubr.bf16.gmra.mrb[0].mxu0 %v836
        %v875 = vpop.f32.mrb[0].mxu0
        %v876 = vadd.f32 0.0, %v875
        %v877 = vpop.f32.mrb[0].mxu0
        %v878 = vpop.f32.mrb[0].mxu0
        %v879 = vpop.f32.mrb[0].mxu0
        %880 = vdwg.mxu0
        %v882 = vsel %vm787, %v773, 0
        %v885 = vsel %vm791, %v781, 0
        %887 = vmatprep.subr.bf16.mxu0 0
        %888 = vmatpush1.bf16.msra.mxu0 %v885
        %889 = vmatprep.subr.bf16.mxu0 0
        %890 = vmatpush1.bf16.msra.mxu0 0
        %891 = vmatprep.subr.bf16.mxu0 0
        %892 = vmatpush1.bf16.msra.mxu0 0
        %893 = vmatprep.subr.bf16.mxu0 0
        %894 = vmatpush1.bf16.msra.mxu0 0
        %895 = vmatprep.subr.bf16.mxu0 0
        %896 = vmatpush1.bf16.msra.mxu0 0
        %897 = vmatprep.subr.bf16.mxu0 0
        %898 = vmatpush1.bf16.msra.mxu0 0
        %899 = vmatprep.subr.bf16.mxu0 0
        %900 = vmatpush1.bf16.msra.mxu0 0
        %901 = vmatprep.subr.bf16.mxu0 0
        %902 = vmatpush1.bf16.msra.mxu0 0
        %903 = vmatprep.subr.bf16.mxu0 0
        %904 = vmatpush1.bf16.msra.mxu0 0
        %905 = vmatprep.subr.bf16.mxu0 0
        %906 = vmatpush1.bf16.msra.mxu0 0
        %907 = vmatprep.subr.bf16.mxu0 0
        %908 = vmatpush1.bf16.msra.mxu0 0
        %909 = vmatprep.subr.bf16.mxu0 0
        %910 = vmatpush1.bf16.msra.mxu0 0
        %911 = vmatprep.subr.bf16.mxu0 0
        %912 = vmatpush1.bf16.msra.mxu0 0
        %913 = vmatprep.subr.bf16.mxu0 0
        %914 = vmatpush1.bf16.msra.mxu0 0
        %915 = vmatprep.subr.bf16.mxu0 0
        %916 = vmatpush1.bf16.msra.mxu0 0
        %917 = vmatprep.subr.bf16.mxu0 0
        %918 = vmatpush1.bf16.msra.mxu0 0
        %919 = vmatprep.mubr.bf16.mxu0 0
        %920 = vmatmul.mubr.bf16.gmra.mrb[0].mxu0 %v882
        %v921 = vpop.f32.mrb[0].mxu0
        %v922 = vadd.f32 0.0, %v921
        %v923 = vpop.f32.mrb[0].mxu0
        %v924 = vpop.f32.mrb[0].mxu0
        %v925 = vpop.f32.mrb[0].mxu0
        %926 = vdwg.mxu0
        %v928 = vsel %vm787, %v774, 0
        %v931 = vsel %vm791, %v782, 0
        %933 = vmatprep.subr.bf16.mxu0 0
        %934 = vmatpush1.bf16.msra.mxu0 %v931
        %935 = vmatprep.subr.bf16.mxu0 0
        %936 = vmatpush1.bf16.msra.mxu0 0
        %937 = vmatprep.subr.bf16.mxu0 0
        %938 = vmatpush1.bf16.msra.mxu0 0
        %939 = vmatprep.subr.bf16.mxu0 0
        %940 = vmatpush1.bf16.msra.mxu0 0
        %941 = vmatprep.subr.bf16.mxu0 0
        %942 = vmatpush1.bf16.msra.mxu0 0
        %943 = vmatprep.subr.bf16.mxu0 0
        %944 = vmatpush1.bf16.msra.mxu0 0
        %945 = vmatprep.subr.bf16.mxu0 0
        %946 = vmatpush1.bf16.msra.mxu0 0
        %947 = vmatprep.subr.bf16.mxu0 0
        %948 = vmatpush1.bf16.msra.mxu0 0
        %949 = vmatprep.subr.bf16.mxu0 0
        %950 = vmatpush1.bf16.msra.mxu0 0
        %951 = vmatprep.subr.bf16.mxu0 0
        %952 = vmatpush1.bf16.msra.mxu0 0
        %953 = vmatprep.subr.bf16.mxu0 0
        %954 = vmatpush1.bf16.msra.mxu0 0
        %955 = vmatprep.subr.bf16.mxu0 0
        %956 = vmatpush1.bf16.msra.mxu0 0
        %957 = vmatprep.subr.bf16.mxu0 0
        %958 = vmatpush1.bf16.msra.mxu0 0
        %959 = vmatprep.subr.bf16.mxu0 0
        %960 = vmatpush1.bf16.msra.mxu0 0
        %961 = vmatprep.subr.bf16.mxu0 0
        %962 = vmatpush1.bf16.msra.mxu0 0
        %963 = vmatprep.subr.bf16.mxu0 0
        %964 = vmatpush1.bf16.msra.mxu0 0
        %965 = vmatprep.mubr.bf16.mxu0 0
        %966 = vmatmul.mubr.bf16.gmra.mrb[0].mxu0 %v928
        %v967 = vpop.f32.mrb[0].mxu0
        %v968 = vadd.f32 0.0, %v967
        %v969 = vpop.f32.mrb[0].mxu0
        %v970 = vpop.f32.mrb[0].mxu0
        %v971 = vpop.f32.mrb[0].mxu0
        %972 = vdwg.mxu0
        %v974 = vsel %vm787, %v775, 0
        %v977 = vsel %vm791, %v783, 0
        %979 = vmatprep.subr.bf16.mxu0 0
        %980 = vmatpush1.bf16.msra.mxu0 %v977
        %981 = vmatprep.subr.bf16.mxu0 0
        %982 = vmatpush1.bf16.msra.mxu0 0
        %983 = vmatprep.subr.bf16.mxu0 0
        %984 = vmatpush1.bf16.msra.mxu0 0
        %985 = vmatprep.subr.bf16.mxu0 0
        %986 = vmatpush1.bf16.msra.mxu0 0
        %987 = vmatprep.subr.bf16.mxu0 0
        %988 = vmatpush1.bf16.msra.mxu0 0
        %989 = vmatprep.subr.bf16.mxu0 0
        %990 = vmatpush1.bf16.msra.mxu0 0
        %991 = vmatprep.subr.bf16.mxu0 0
        %992 = vmatpush1.bf16.msra.mxu0 0
        %993 = vmatprep.subr.bf16.mxu0 0
        %994 = vmatpush1.bf16.msra.mxu0 0
        %995 = vmatprep.subr.bf16.mxu0 0
        %996 = vmatpush1.bf16.msra.mxu0 0
        %997 = vmatprep.subr.bf16.mxu0 0
        %998 = vmatpush1.bf16.msra.mxu0 0
        %999 = vmatprep.subr.bf16.mxu0 0
        %1000 = vmatpush1.bf16.msra.mxu0 0
        %1001 = vmatprep.subr.bf16.mxu0 0
        %1002 = vmatpush1.bf16.msra.mxu0 0
        %1003 = vmatprep.subr.bf16.mxu0 0
        %1004 = vmatpush1.bf16.msra.mxu0 0
        %1005 = vmatprep.subr.bf16.mxu0 0
        %1006 = vmatpush1.bf16.msra.mxu0 0
        %1007 = vmatprep.subr.bf16.mxu0 0
        %1008 = vmatpush1.bf16.msra.mxu0 0
        %1009 = vmatprep.subr.bf16.mxu0 0
        %1010 = vmatpush1.bf16.msra.mxu0 0
        %1011 = vmatprep.mubr.bf16.mxu0 0
        %1012 = vmatmul.mubr.bf16.gmra.mrb[0].mxu0 %v974
        %v1013 = vpop.f32.mrb[0].mxu0
        %v1014 = vadd.f32 0.0, %v1013
        %v1015 = vpop.f32.mrb[0].mxu0
        %v1016 = vpop.f32.mrb[0].mxu0
        %v1017 = vpop.f32.mrb[0].mxu0
        %1018 = vdwg.mxu0
        %v1020 = vsel %vm787, %v776, 0
        %v1023 = vsel %vm791, %v784, 0
        %1025 = vmatprep.subr.bf16.mxu0 0
        %1026 = vmatpush1.bf16.msra.mxu0 %v1023
        %1027 = vmatprep.subr.bf16.mxu0 0
        %1028 = vmatpush1.bf16.msra.mxu0 0
        %1029 = vmatprep.subr.bf16.mxu0 0
        %1030 = vmatpush1.bf16.msra.mxu0 0
        %1031 = vmatprep.subr.bf16.mxu0 0
        %1032 = vmatpush1.bf16.msra.mxu0 0
        %1033 = vmatprep.subr.bf16.mxu0 0
        %1034 = vmatpush1.bf16.msra.mxu0 0
        %1035 = vmatprep.subr.bf16.mxu0 0
        %1036 = vmatpush1.bf16.msra.mxu0 0
        %1037 = vmatprep.subr.bf16.mxu0 0
        %1038 = vmatpush1.bf16.msra.mxu0 0
        %1039 = vmatprep.subr.bf16.mxu0 0
        %1040 = vmatpush1.bf16.msra.mxu0 0
        %1041 = vmatprep.subr.bf16.mxu0 0
        %1042 = vmatpush1.bf16.msra.mxu0 0
        %1043 = vmatprep.subr.bf16.mxu0 0
        %1044 = vmatpush1.bf16.msra.mxu0 0
        %1045 = vmatprep.subr.bf16.mxu0 0
        %1046 = vmatpush1.bf16.msra.mxu0 0
        %1047 = vmatprep.subr.bf16.mxu0 0
        %1048 = vmatpush1.bf16.msra.mxu0 0
        %1049 = vmatprep.subr.bf16.mxu0 0
        %1050 = vmatpush1.bf16.msra.mxu0 0
        %1051 = vmatprep.subr.bf16.mxu0 0
        %1052 = vmatpush1.bf16.msra.mxu0 0
        %1053 = vmatprep.subr.bf16.mxu0 0
        %1054 = vmatpush1.bf16.msra.mxu0 0
        %1055 = vmatprep.subr.bf16.mxu0 0
        %1056 = vmatpush1.bf16.msra.mxu0 0
        %1057 = vmatprep.mubr.bf16.mxu0 0
        %1058 = vmatmul.mubr.bf16.gmra.mrb[0].mxu0 %v1020
        %v1059 = vpop.f32.mrb[0].mxu0
        %v1060 = vadd.f32 0.0, %v1059
        %v1061 = vpop.f32.mrb[0].mxu0
        %v1062 = vpop.f32.mrb[0].mxu0
        %v1063 = vpop.f32.mrb[0].mxu0
        %1064 = vdwg.mxu0
        %v1066 = vsel %vm787, %v777, 0
        %v1069 = vsel %vm791, %v785, 0
        %1071 = vmatprep.subr.bf16.mxu0 0
        %1072 = vmatpush1.bf16.msra.mxu0 %v1069
        %1073 = vmatprep.subr.bf16.mxu0 0
        %1074 = vmatpush1.bf16.msra.mxu0 0
        %1075 = vmatprep.subr.bf16.mxu0 0
        %1076 = vmatpush1.bf16.msra.mxu0 0
        %1077 = vmatprep.subr.bf16.mxu0 0
        %1078 = vmatpush1.bf16.msra.mxu0 0
        %1079 = vmatprep.subr.bf16.mxu0 0
        %1080 = vmatpush1.bf16.msra.mxu0 0
        %1081 = vmatprep.subr.bf16.mxu0 0
        %1082 = vmatpush1.bf16.msra.mxu0 0
        %1083 = vmatprep.subr.bf16.mxu0 0
        %1084 = vmatpush1.bf16.msra.mxu0 0
        %1085 = vmatprep.subr.bf16.mxu0 0
        %1086 = vmatpush1.bf16.msra.mxu0 0
        %1087 = vmatprep.subr.bf16.mxu0 0
        %1088 = vmatpush1.bf16.msra.mxu0 0
        %1089 = vmatprep.subr.bf16.mxu0 0
        %1090 = vmatpush1.bf16.msra.mxu0 0
        %1091 = vmatprep.subr.bf16.mxu0 0
        %1092 = vmatpush1.bf16.msra.mxu0 0
        %1093 = vmatprep.subr.bf16.mxu0 0
        %1094 = vmatpush1.bf16.msra.mxu0 0
        %1095 = vmatprep.subr.bf16.mxu0 0
        %1096 = vmatpush1.bf16.msra.mxu0 0
        %1097 = vmatprep.subr.bf16.mxu0 0
        %1098 = vmatpush1.bf16.msra.mxu0 0
        %1099 = vmatprep.subr.bf16.mxu0 0
        %1100 = vmatpush1.bf16.msra.mxu0 0
        %1101 = vmatprep.subr.bf16.mxu0 0
        %1102 = vmatpush1.bf16.msra.mxu0 0
        %1103 = vmatprep.mubr.bf16.mxu0 0
        %1104 = vmatmul.mubr.bf16.gmra.mrb[0].mxu0 %v1066
        %v1105 = vpop.f32.mrb[0].mxu0
        %v1106 = vadd.f32 0.0, %v1105
        %v1107 = vpop.f32.mrb[0].mxu0
        %v1108 = vpop.f32.mrb[0].mxu0
        %v1109 = vpop.f32.mrb[0].mxu0
        %1110 = vdwg.mxu0
        %v1112 = vsel %vm787, %v778, 0
        %v1115 = vsel %vm791, %v786, 0
        %1117 = vmatprep.subr.bf16.mxu0 0
        %1118 = vmatpush1.bf16.msra.mxu0 %v1115
        %1119 = vmatprep.subr.bf16.mxu0 0
        %1120 = vmatpush1.bf16.msra.mxu0 0
        %1121 = vmatprep.subr.bf16.mxu0 0
        %1122 = vmatpush1.bf16.msra.mxu0 0
        %1123 = vmatprep.subr.bf16.mxu0 0
        %1124 = vmatpush1.bf16.msra.mxu0 0
        %1125 = vmatprep.subr.bf16.mxu0 0
        %1126 = vmatpush1.bf16.msra.mxu0 0
        %1127 = vmatprep.subr.bf16.mxu0 0
        %1128 = vmatpush1.bf16.msra.mxu0 0
        %1129 = vmatprep.subr.bf16.mxu0 0
        %1130 = vmatpush1.bf16.msra.mxu0 0
        %1131 = vmatprep.subr.bf16.mxu0 0
        %1132 = vmatpush1.bf16.msra.mxu0 0
        %1133 = vmatprep.subr.bf16.mxu0 0
        %1134 = vmatpush1.bf16.msra.mxu0 0
        %1135 = vmatprep.subr.bf16.mxu0 0
        %1136 = vmatpush1.bf16.msra.mxu0 0
        %1137 = vmatprep.subr.bf16.mxu0 0
        %1138 = vmatpush1.bf16.msra.mxu0 0
        %1139 = vmatprep.subr.bf16.mxu0 0
        %1140 = vmatpush1.bf16.msra.mxu0 0
        %1141 = vmatprep.subr.bf16.mxu0 0
        %1142 = vmatpush1.bf16.msra.mxu0 0
        %1143 = vmatprep.subr.bf16.mxu0 0
        %1144 = vmatpush1.bf16.msra.mxu0 0
        %1145 = vmatprep.subr.bf16.mxu0 0
        %1146 = vmatpush1.bf16.msra.mxu0 0
        %1147 = vmatprep.subr.bf16.mxu0 0
        %1148 = vmatpush1.bf16.msra.mxu0 0
        %1149 = vmatprep.mubr.bf16.mxu0 0
        %1150 = vmatmul.mubr.bf16.gmra.mrb[0].mxu0 %v1112
        %v1151 = vpop.f32.mrb[0].mxu0
        %v1152 = vadd.f32 0.0, %v1151
        %v1153 = vpop.f32.mrb[0].mxu0
        %v1154 = vpop.f32.mrb[0].mxu0
        %v1155 = vpop.f32.mrb[0].mxu0
        %1156 = vdwg.mxu0
        %v1157 = vld [vmem:[%s335] sm:$0x1]
        %v1158 = vld [vmem:[%s335 + $0x1] sm:$0x1]
        %v1161 = vlaneseq
        %v1162 = vshrl.u32 %v1161, 7
        %v1163 = vsub.s32 0, %v1162
        %v1164 = vrot.slane %v1157, %v1163
        %v1165 = vlaneseq
        %v1166 = vshrl.u32 %v1165, 7
        %v1167 = vsub.s32 0, %v1166
        %v1168 = vrot.slane %v1158, %v1167
        %v1171 = vadd.f32 %v830, %v1164
        %v1172 = vadd.f32 %v876, %v1164
        %v1173 = vadd.f32 %v922, %v1164
        %v1174 = vadd.f32 %v968, %v1164
        %v1175 = vadd.f32 %v1014, %v1168
        %v1176 = vadd.f32 %v1060, %v1168
        %v1177 = vadd.f32 %v1106, %v1168
        %v1178 = vadd.f32 %v1152, %v1168
        %v1179 = vsel %vm787, %v1171, -inf
        %1180 = vmax.xlane.f32.xlu0 %v1179
        %v1181 = vpop.xlane.xlu0 %1180
        %v1182 = vsel %vm787, %v1172, -inf
        %1183 = vmax.xlane.f32.xlu0 %v1182
        %v1184 = vpop.xlane.xlu0 %1183
        %v1185 = vsel %vm787, %v1173, -inf
        %1186 = vmax.xlane.f32.xlu0 %v1185
        %v1187 = vpop.xlane.xlu0 %1186
        %v1188 = vsel %vm787, %v1174, -inf
        %1189 = vmax.xlane.f32.xlu0 %v1188
        %v1190 = vpop.xlane.xlu0 %1189
        %v1191 = vsel %vm787, %v1175, -inf
        %1192 = vmax.xlane.f32.xlu0 %v1191
        %v1193 = vpop.xlane.xlu0 %1192
        %v1194 = vsel %vm787, %v1176, -inf
        %1195 = vmax.xlane.f32.xlu0 %v1194
        %v1196 = vpop.xlane.xlu0 %1195
        %v1197 = vsel %vm787, %v1177, -inf
        %1198 = vmax.xlane.f32.xlu0 %v1197
        %v1199 = vpop.xlane.xlu0 %1198
        %v1200 = vsel %vm787, %v1178, -inf
        %1201 = vmax.xlane.f32.xlu0 %v1200
        %v1202 = vpop.xlane.xlu0 %1201
        %v1203 = vsub.f32 %v1171, %v1181
        %v1204 = vsub.f32 %v1172, %v1184
        %v1205 = vsub.f32 %v1173, %v1187
        %v1206 = vsub.f32 %v1174, %v1190
        %v1207 = vsub.f32 %v1175, %v1193
        %v1208 = vsub.f32 %v1176, %v1196
        %v1209 = vsub.f32 %v1177, %v1199
        %v1210 = vsub.f32 %v1178, %v1202
        %v1211 = vmul.f32 %v1203, 1.442695
        %v1212 = vpow.pop %v1211
        %v1213 = vmul.f32 %v1204, 1.442695
        %v1214 = vpow.pop %v1213
        %v1215 = vmul.f32 %v1205, 1.442695
        %v1216 = vpow.pop %v1215
        %v1217 = vmul.f32 %v1206, 1.442695
        %v1218 = vpow.pop %v1217
        %v1219 = vmul.f32 %v1207, 1.442695
        %v1220 = vpow.pop %v1219
        %v1221 = vmul.f32 %v1208, 1.442695
        %v1222 = vpow.pop %v1221
        %v1223 = vmul.f32 %v1209, 1.442695
        %v1224 = vpow.pop %v1223
        %v1225 = vmul.f32 %v1210, 1.442695
        %v1226 = vpow.pop %v1225
        %v1227 = vsel %vm787, %v1212, 0.0
        %1228 = vadd.xlane.f32.xlu0 %v1227
        %v1229 = vpop.xlane.xlu0 %1228
        %v1230 = vsel %vm787, %v1214, 0.0
        %1231 = vadd.xlane.f32.xlu0 %v1230
        %v1232 = vpop.xlane.xlu0 %1231
        %v1233 = vsel %vm787, %v1216, 0.0
        %1234 = vadd.xlane.f32.xlu0 %v1233
        %v1235 = vpop.xlane.xlu0 %1234
        %v1236 = vsel %vm787, %v1218, 0.0
        %1237 = vadd.xlane.f32.xlu0 %v1236
        %v1238 = vpop.xlane.xlu0 %1237
        %v1239 = vsel %vm787, %v1220, 0.0
        %1240 = vadd.xlane.f32.xlu0 %v1239
        %v1241 = vpop.xlane.xlu0 %1240
        %v1242 = vsel %vm787, %v1222, 0.0
        %1243 = vadd.xlane.f32.xlu0 %v1242
        %v1244 = vpop.xlane.xlu0 %1243
        %v1245 = vsel %vm787, %v1224, 0.0
        %1246 = vadd.xlane.f32.xlu0 %v1245
        %v1247 = vpop.xlane.xlu0 %1246
        %v1248 = vsel %vm787, %v1226, 0.0
        %1249 = vadd.xlane.f32.xlu0 %v1248
        %v1250 = vpop.xlane.xlu0 %1249
        %v1251 = vrcp.pop %v1229
        %v1252 = vrcp.pop %v1232
        %v1253 = vrcp.pop %v1235
        %v1254 = vrcp.pop %v1238
        %v1255 = vrcp.pop %v1241
        %v1256 = vrcp.pop %v1244
        %v1257 = vrcp.pop %v1247
        %v1258 = vrcp.pop %v1250
        %v1259 = vmul.f32 %v1212, %v1251
        %v1260 = vmul.f32 %v1214, %v1252
        %v1261 = vmul.f32 %v1216, %v1253
        %v1262 = vmul.f32 %v1218, %v1254
        %v1263 = vmul.f32 %v1220, %v1255
        %v1264 = vmul.f32 %v1222, %v1256
        %v1265 = vmul.f32 %v1224, %v1257
        %v1266 = vmul.f32 %v1226, %v1258
        %v1267 = vpack.c.bf16 %v475, %v475
        %v1268 = vpack.c.bf16 %v476, %v476
        %v1269 = vpack.c.bf16 %v477, %v477
        %v1270 = vpack.c.bf16 %v478, %v478
        %v1271 = vpack.c.bf16 %v507, %v507
        %v1272 = vpack.c.bf16 %v508, %v508
        %v1273 = vpack.c.bf16 %v509, %v509
        %v1274 = vpack.c.bf16 %v510, %v510
        %v1275 = vpack.c.bf16 %v1259, %v1259
        %v1276 = vpack.c.bf16 %v1260, %v1260
        %v1277 = vpack.c.bf16 %v1261, %v1261
        %v1278 = vpack.c.bf16 %v1262, %v1262
        %v1279 = vpack.c.bf16 %v1263, %v1263
        %v1280 = vpack.c.bf16 %v1264, %v1264
        %v1281 = vpack.c.bf16 %v1265, %v1265
        %v1282 = vpack.c.bf16 %v1266, %v1266
        %v1284 = vsel %vm787, %v1267, 0
        %v1287 = vsel %vm787, %v1275, 0
        %1289 = vmatprep.subr.bf16.mxu0 0
        %1290 = vmatpush1.bf16.xpose.msra.mxu0 %v1287
        %1291 = vmatprep.subr.bf16.mxu0 0
        %1292 = vmatpush1.bf16.xpose.msra.mxu0 0
        %1293 = vmatprep.subr.bf16.mxu0 0
        %1294 = vmatpush1.bf16.xpose.msra.mxu0 0
        %1295 = vmatprep.subr.bf16.mxu0 0
        %1296 = vmatpush1.bf16.xpose.msra.mxu0 0
        %1297 = vmatprep.subr.bf16.mxu0 0
        %1298 = vmatpush1.bf16.xpose.msra.mxu0 0
        %1299 = vmatprep.subr.bf16.mxu0 0
        %1300 = vmatpush1.bf16.xpose.msra.mxu0 0
        %1301 = vmatprep.subr.bf16.mxu0 0
        %1302 = vmatpush1.bf16.xpose.msra.mxu0 0
        %1303 = vmatprep.subr.bf16.mxu0 0
        %1304 = vmatpush1.bf16.xpose.msra.mxu0 0
        %1305 = vmatprep.subr.bf16.mxu0 0
        %1306 = vmatpush1.bf16.xpose.msra.mxu0 0
        %1307 = vmatprep.subr.bf16.mxu0 0
        %1308 = vmatpush1.bf16.xpose.msra.mxu0 0
        %1309 = vmatprep.subr.bf16.mxu0 0
        %1310 = vmatpush1.bf16.xpose.msra.mxu0 0
        %1311 = vmatprep.subr.bf16.mxu0 0
        %1312 = vmatpush1.bf16.xpose.msra.mxu0 0
        %1313 = vmatprep.subr.bf16.mxu0 0
        %1314 = vmatpush1.bf16.xpose.msra.mxu0 0
        %1315 = vmatprep.subr.bf16.mxu0 0
        %1316 = vmatpush1.bf16.xpose.msra.mxu0 0
        %1317 = vmatprep.subr.bf16.mxu0 0
        %1318 = vmatpush1.bf16.xpose.msra.mxu0 0
        %1319 = vmatprep.subr.bf16.mxu0 0
        %1320 = vmatpush1.bf16.xpose.msra.mxu0 0
        %1321 = vmatprep.mubr.bf16.mxu0 0
        %1322 = vmatmul.mubr.bf16.gmra.mrb[0].mxu0 %v1284
        %v1323 = vpop.f32.mrb[0].mxu0
        %v1324 = vadd.f32 0.0, %v1323
        %v1325 = vpop.f32.mrb[0].mxu0
        %v1326 = vpop.f32.mrb[0].mxu0
        %v1327 = vpop.f32.mrb[0].mxu0
        %1328 = vdwg.mxu0
        %v1330 = vsel %vm787, %v1268, 0
        %v1333 = vsel %vm787, %v1276, 0
        %1335 = vmatprep.subr.bf16.mxu0 0
        %1336 = vmatpush1.bf16.xpose.msra.mxu0 %v1333
        %1337 = vmatprep.subr.bf16.mxu0 0
        %1338 = vmatpush1.bf16.xpose.msra.mxu0 0
        %1339 = vmatprep.subr.bf16.mxu0 0
        %1340 = vmatpush1.bf16.xpose.msra.mxu0 0
        %1341 = vmatprep.subr.bf16.mxu0 0
        %1342 = vmatpush1.bf16.xpose.msra.mxu0 0
        %1343 = vmatprep.subr.bf16.mxu0 0
        %1344 = vmatpush1.bf16.xpose.msra.mxu0 0
        %1345 = vmatprep.subr.bf16.mxu0 0
        %1346 = vmatpush1.bf16.xpose.msra.mxu0 0
        %1347 = vmatprep.subr.bf16.mxu0 0
        %1348 = vmatpush1.bf16.xpose.msra.mxu0 0
        %1349 = vmatprep.subr.bf16.mxu0 0
        %1350 = vmatpush1.bf16.xpose.msra.mxu0 0
        %1351 = vmatprep.subr.bf16.mxu0 0
        %1352 = vmatpush1.bf16.xpose.msra.mxu0 0
        %1353 = vmatprep.subr.bf16.mxu0 0
        %1354 = vmatpush1.bf16.xpose.msra.mxu0 0
        %1355 = vmatprep.subr.bf16.mxu0 0
        %1356 = vmatpush1.bf16.xpose.msra.mxu0 0
        %1357 = vmatprep.subr.bf16.mxu0 0
        %1358 = vmatpush1.bf16.xpose.msra.mxu0 0
        %1359 = vmatprep.subr.bf16.mxu0 0
        %1360 = vmatpush1.bf16.xpose.msra.mxu0 0
        %1361 = vmatprep.subr.bf16.mxu0 0
        %1362 = vmatpush1.bf16.xpose.msra.mxu0 0
        %1363 = vmatprep.subr.bf16.mxu0 0
        %1364 = vmatpush1.bf16.xpose.msra.mxu0 0
        %1365 = vmatprep.subr.bf16.mxu0 0
        %1366 = vmatpush1.bf16.xpose.msra.mxu0 0
        %1367 = vmatprep.mubr.bf16.mxu0 0
        %1368 = vmatmul.mubr.bf16.gmra.mrb[0].mxu0 %v1330
        %v1369 = vpop.f32.mrb[0].mxu0
        %v1370 = vadd.f32 0.0, %v1369
        %v1371 = vpop.f32.mrb[0].mxu0
        %v1372 = vpop.f32.mrb[0].mxu0
        %v1373 = vpop.f32.mrb[0].mxu0
        %1374 = vdwg.mxu0
        %v1376 = vsel %vm787, %v1269, 0
        %v1379 = vsel %vm787, %v1277, 0
        %1381 = vmatprep.subr.bf16.mxu0 0
        %1382 = vmatpush1.bf16.xpose.msra.mxu0 %v1379
        %1383 = vmatprep.subr.bf16.mxu0 0
        %1384 = vmatpush1.bf16.xpose.msra.mxu0 0
        %1385 = vmatprep.subr.bf16.mxu0 0
        %1386 = vmatpush1.bf16.xpose.msra.mxu0 0
        %1387 = vmatprep.subr.bf16.mxu0 0
        %1388 = vmatpush1.bf16.xpose.msra.mxu0 0
        %1389 = vmatprep.subr.bf16.mxu0 0
        %1390 = vmatpush1.bf16.xpose.msra.mxu0 0
        %1391 = vmatprep.subr.bf16.mxu0 0
        %1392 = vmatpush1.bf16.xpose.msra.mxu0 0
        %1393 = vmatprep.subr.bf16.mxu0 0
        %1394 = vmatpush1.bf16.xpose.msra.mxu0 0
        %1395 = vmatprep.subr.bf16.mxu0 0
        %1396 = vmatpush1.bf16.xpose.msra.mxu0 0
        %1397 = vmatprep.subr.bf16.mxu0 0
        %1398 = vmatpush1.bf16.xpose.msra.mxu0 0
        %1399 = vmatprep.subr.bf16.mxu0 0
        %1400 = vmatpush1.bf16.xpose.msra.mxu0 0
        %1401 = vmatprep.subr.bf16.mxu0 0
        %1402 = vmatpush1.bf16.xpose.msra.mxu0 0
        %1403 = vmatprep.subr.bf16.mxu0 0
        %1404 = vmatpush1.bf16.xpose.msra.mxu0 0
        %1405 = vmatprep.subr.bf16.mxu0 0
        %1406 = vmatpush1.bf16.xpose.msra.mxu0 0
        %1407 = vmatprep.subr.bf16.mxu0 0
        %1408 = vmatpush1.bf16.xpose.msra.mxu0 0
        %1409 = vmatprep.subr.bf16.mxu0 0
        %1410 = vmatpush1.bf16.xpose.msra.mxu0 0
        %1411 = vmatprep.subr.bf16.mxu0 0
        %1412 = vmatpush1.bf16.xpose.msra.mxu0 0
        %1413 = vmatprep.mubr.bf16.mxu0 0
        %1414 = vmatmul.mubr.bf16.gmra.mrb[0].mxu0 %v1376
        %v1415 = vpop.f32.mrb[0].mxu0
        %v1416 = vadd.f32 0.0, %v1415
        %v1417 = vpop.f32.mrb[0].mxu0
        %v1418 = vpop.f32.mrb[0].mxu0
        %v1419 = vpop.f32.mrb[0].mxu0
        %1420 = vdwg.mxu0
        %v1422 = vsel %vm787, %v1270, 0
        %v1425 = vsel %vm787, %v1278, 0
        %1427 = vmatprep.subr.bf16.mxu0 0
        %1428 = vmatpush1.bf16.xpose.msra.mxu0 %v1425
        %1429 = vmatprep.subr.bf16.mxu0 0
        %1430 = vmatpush1.bf16.xpose.msra.mxu0 0
        %1431 = vmatprep.subr.bf16.mxu0 0
        %1432 = vmatpush1.bf16.xpose.msra.mxu0 0
        %1433 = vmatprep.subr.bf16.mxu0 0
        %1434 = vmatpush1.bf16.xpose.msra.mxu0 0
        %1435 = vmatprep.subr.bf16.mxu0 0
        %1436 = vmatpush1.bf16.xpose.msra.mxu0 0
        %1437 = vmatprep.subr.bf16.mxu0 0
        %1438 = vmatpush1.bf16.xpose.msra.mxu0 0
        %1439 = vmatprep.subr.bf16.mxu0 0
        %1440 = vmatpush1.bf16.xpose.msra.mxu0 0
        %1441 = vmatprep.subr.bf16.mxu0 0
        %1442 = vmatpush1.bf16.xpose.msra.mxu0 0
        %1443 = vmatprep.subr.bf16.mxu0 0
        %1444 = vmatpush1.bf16.xpose.msra.mxu0 0
        %1445 = vmatprep.subr.bf16.mxu0 0
        %1446 = vmatpush1.bf16.xpose.msra.mxu0 0
        %1447 = vmatprep.subr.bf16.mxu0 0
        %1448 = vmatpush1.bf16.xpose.msra.mxu0 0
        %1449 = vmatprep.subr.bf16.mxu0 0
        %1450 = vmatpush1.bf16.xpose.msra.mxu0 0
        %1451 = vmatprep.subr.bf16.mxu0 0
        %1452 = vmatpush1.bf16.xpose.msra.mxu0 0
        %1453 = vmatprep.subr.bf16.mxu0 0
        %1454 = vmatpush1.bf16.xpose.msra.mxu0 0
        %1455 = vmatprep.subr.bf16.mxu0 0
        %1456 = vmatpush1.bf16.xpose.msra.mxu0 0
        %1457 = vmatprep.subr.bf16.mxu0 0
        %1458 = vmatpush1.bf16.xpose.msra.mxu0 0
        %1459 = vmatprep.mubr.bf16.mxu0 0
        %1460 = vmatmul.mubr.bf16.gmra.mrb[0].mxu0 %v1422
        %v1461 = vpop.f32.mrb[0].mxu0
        %v1462 = vadd.f32 0.0, %v1461
        %v1463 = vpop.f32.mrb[0].mxu0
        %v1464 = vpop.f32.mrb[0].mxu0
        %v1465 = vpop.f32.mrb[0].mxu0
        %1466 = vdwg.mxu0
        %v1468 = vsel %vm787, %v1271, 0
        %v1471 = vsel %vm787, %v1279, 0
        %1473 = vmatprep.subr.bf16.mxu0 0
        %1474 = vmatpush1.bf16.xpose.msra.mxu0 %v1471
        %1475 = vmatprep.subr.bf16.mxu0 0
        %1476 = vmatpush1.bf16.xpose.msra.mxu0 0
        %1477 = vmatprep.subr.bf16.mxu0 0
        %1478 = vmatpush1.bf16.xpose.msra.mxu0 0
        %1479 = vmatprep.subr.bf16.mxu0 0
        %1480 = vmatpush1.bf16.xpose.msra.mxu0 0
        %1481 = vmatprep.subr.bf16.mxu0 0
        %1482 = vmatpush1.bf16.xpose.msra.mxu0 0
        %1483 = vmatprep.subr.bf16.mxu0 0
        %1484 = vmatpush1.bf16.xpose.msra.mxu0 0
        %1485 = vmatprep.subr.bf16.mxu0 0
        %1486 = vmatpush1.bf16.xpose.msra.mxu0 0
        %1487 = vmatprep.subr.bf16.mxu0 0
        %1488 = vmatpush1.bf16.xpose.msra.mxu0 0
        %1489 = vmatprep.subr.bf16.mxu0 0
        %1490 = vmatpush1.bf16.xpose.msra.mxu0 0
        %1491 = vmatprep.subr.bf16.mxu0 0
        %1492 = vmatpush1.bf16.xpose.msra.mxu0 0
        %1493 = vmatprep.subr.bf16.mxu0 0
        %1494 = vmatpush1.bf16.xpose.msra.mxu0 0
        %1495 = vmatprep.subr.bf16.mxu0 0
        %1496 = vmatpush1.bf16.xpose.msra.mxu0 0
        %1497 = vmatprep.subr.bf16.mxu0 0
        %1498 = vmatpush1.bf16.xpose.msra.mxu0 0
        %1499 = vmatprep.subr.bf16.mxu0 0
        %1500 = vmatpush1.bf16.xpose.msra.mxu0 0
        %1501 = vmatprep.subr.bf16.mxu0 0
        %1502 = vmatpush1.bf16.xpose.msra.mxu0 0
        %1503 = vmatprep.subr.bf16.mxu0 0
        %1504 = vmatpush1.bf16.xpose.msra.mxu0 0
        %1505 = vmatprep.mubr.bf16.mxu0 0
        %1506 = vmatmul.mubr.bf16.gmra.mrb[0].mxu0 %v1468
        %v1507 = vpop.f32.mrb[0].mxu0
        %v1508 = vadd.f32 0.0, %v1507
        %v1509 = vpop.f32.mrb[0].mxu0
        %v1510 = vpop.f32.mrb[0].mxu0
        %v1511 = vpop.f32.mrb[0].mxu0
        %1512 = vdwg.mxu0
        %v1514 = vsel %vm787, %v1272, 0
        %v1517 = vsel %vm787, %v1280, 0
        %1519 = vmatprep.subr.bf16.mxu0 0
        %1520 = vmatpush1.bf16.xpose.msra.mxu0 %v1517
        %1521 = vmatprep.subr.bf16.mxu0 0
        %1522 = vmatpush1.bf16.xpose.msra.mxu0 0
        %1523 = vmatprep.subr.bf16.mxu0 0
        %1524 = vmatpush1.bf16.xpose.msra.mxu0 0
        %1525 = vmatprep.subr.bf16.mxu0 0
        %1526 = vmatpush1.bf16.xpose.msra.mxu0 0
        %1527 = vmatprep.subr.bf16.mxu0 0
        %1528 = vmatpush1.bf16.xpose.msra.mxu0 0
        %1529 = vmatprep.subr.bf16.mxu0 0
        %1530 = vmatpush1.bf16.xpose.msra.mxu0 0
        %1531 = vmatprep.subr.bf16.mxu0 0
        %1532 = vmatpush1.bf16.xpose.msra.mxu0 0
        %1533 = vmatprep.subr.bf16.mxu0 0
        %1534 = vmatpush1.bf16.xpose.msra.mxu0 0
        %1535 = vmatprep.subr.bf16.mxu0 0
        %1536 = vmatpush1.bf16.xpose.msra.mxu0 0
        %1537 = vmatprep.subr.bf16.mxu0 0
        %1538 = vmatpush1.bf16.xpose.msra.mxu0 0
        %1539 = vmatprep.subr.bf16.mxu0 0
        %1540 = vmatpush1.bf16.xpose.msra.mxu0 0
        %1541 = vmatprep.subr.bf16.mxu0 0
        %1542 = vmatpush1.bf16.xpose.msra.mxu0 0
        %1543 = vmatprep.subr.bf16.mxu0 0
        %1544 = vmatpush1.bf16.xpose.msra.mxu0 0
        %1545 = vmatprep.subr.bf16.mxu0 0
        %1546 = vmatpush1.bf16.xpose.msra.mxu0 0
        %1547 = vmatprep.subr.bf16.mxu0 0
        %1548 = vmatpush1.bf16.xpose.msra.mxu0 0
        %1549 = vmatprep.subr.bf16.mxu0 0
        %1550 = vmatpush1.bf16.xpose.msra.mxu0 0
        %1551 = vmatprep.mubr.bf16.mxu0 0
        %1552 = vmatmul.mubr.bf16.gmra.mrb[0].mxu0 %v1514
        %v1553 = vpop.f32.mrb[0].mxu0
        %v1554 = vadd.f32 0.0, %v1553
        %v1555 = vpop.f32.mrb[0].mxu0
        %v1556 = vpop.f32.mrb[0].mxu0
        %v1557 = vpop.f32.mrb[0].mxu0
        %1558 = vdwg.mxu0
        %v1560 = vsel %vm787, %v1273, 0
        %v1563 = vsel %vm787, %v1281, 0
        %1565 = vmatprep.subr.bf16.mxu0 0
        %1566 = vmatpush1.bf16.xpose.msra.mxu0 %v1563
        %1567 = vmatprep.subr.bf16.mxu0 0
        %1568 = vmatpush1.bf16.xpose.msra.mxu0 0
        %1569 = vmatprep.subr.bf16.mxu0 0
        %1570 = vmatpush1.bf16.xpose.msra.mxu0 0
        %1571 = vmatprep.subr.bf16.mxu0 0
        %1572 = vmatpush1.bf16.xpose.msra.mxu0 0
        %1573 = vmatprep.subr.bf16.mxu0 0
        %1574 = vmatpush1.bf16.xpose.msra.mxu0 0
        %1575 = vmatprep.subr.bf16.mxu0 0
        %1576 = vmatpush1.bf16.xpose.msra.mxu0 0
        %1577 = vmatprep.subr.bf16.mxu0 0
        %1578 = vmatpush1.bf16.xpose.msra.mxu0 0
        %1579 = vmatprep.subr.bf16.mxu0 0
        %1580 = vmatpush1.bf16.xpose.msra.mxu0 0
        %1581 = vmatprep.subr.bf16.mxu0 0
        %1582 = vmatpush1.bf16.xpose.msra.mxu0 0
        %1583 = vmatprep.subr.bf16.mxu0 0
        %1584 = vmatpush1.bf16.xpose.msra.mxu0 0
        %1585 = vmatprep.subr.bf16.mxu0 0
        %1586 = vmatpush1.bf16.xpose.msra.mxu0 0
        %1587 = vmatprep.subr.bf16.mxu0 0
        %1588 = vmatpush1.bf16.xpose.msra.mxu0 0
        %1589 = vmatprep.subr.bf16.mxu0 0
        %1590 = vmatpush1.bf16.xpose.msra.mxu0 0
        %1591 = vmatprep.subr.bf16.mxu0 0
        %1592 = vmatpush1.bf16.xpose.msra.mxu0 0
        %1593 = vmatprep.subr.bf16.mxu0 0
        %1594 = vmatpush1.bf16.xpose.msra.mxu0 0
        %1595 = vmatprep.subr.bf16.mxu0 0
        %1596 = vmatpush1.bf16.xpose.msra.mxu0 0
        %1597 = vmatprep.mubr.bf16.mxu0 0
        %1598 = vmatmul.mubr.bf16.gmra.mrb[0].mxu0 %v1560
        %v1599 = vpop.f32.mrb[0].mxu0
        %v1600 = vadd.f32 0.0, %v1599
        %v1601 = vpop.f32.mrb[0].mxu0
        %v1602 = vpop.f32.mrb[0].mxu0
        %v1603 = vpop.f32.mrb[0].mxu0
        %1604 = vdwg.mxu0
        %v1606 = vsel %vm787, %v1274, 0
        %v1609 = vsel %vm787, %v1282, 0
        %1611 = vmatprep.subr.bf16.mxu0 0
        %1612 = vmatpush1.bf16.xpose.msra.mxu0 %v1609
        %1613 = vmatprep.subr.bf16.mxu0 0
        %1614 = vmatpush1.bf16.xpose.msra.mxu0 0
        %1615 = vmatprep.subr.bf16.mxu0 0
        %1616 = vmatpush1.bf16.xpose.msra.mxu0 0
        %1617 = vmatprep.subr.bf16.mxu0 0
        %1618 = vmatpush1.bf16.xpose.msra.mxu0 0
        %1619 = vmatprep.subr.bf16.mxu0 0
        %1620 = vmatpush1.bf16.xpose.msra.mxu0 0
        %1621 = vmatprep.subr.bf16.mxu0 0
        %1622 = vmatpush1.bf16.xpose.msra.mxu0 0
        %1623 = vmatprep.subr.bf16.mxu0 0
        %1624 = vmatpush1.bf16.xpose.msra.mxu0 0
        %1625 = vmatprep.subr.bf16.mxu0 0
        %1626 = vmatpush1.bf16.xpose.msra.mxu0 0
        %1627 = vmatprep.subr.bf16.mxu0 0
        %1628 = vmatpush1.bf16.xpose.msra.mxu0 0
        %1629 = vmatprep.subr.bf16.mxu0 0
        %1630 = vmatpush1.bf16.xpose.msra.mxu0 0
        %1631 = vmatprep.subr.bf16.mxu0 0
        %1632 = vmatpush1.bf16.xpose.msra.mxu0 0
        %1633 = vmatprep.subr.bf16.mxu0 0
        %1634 = vmatpush1.bf16.xpose.msra.mxu0 0
        %1635 = vmatprep.subr.bf16.mxu0 0
        %1636 = vmatpush1.bf16.xpose.msra.mxu0 0
        %1637 = vmatprep.subr.bf16.mxu0 0
        %1638 = vmatpush1.bf16.xpose.msra.mxu0 0
        %1639 = vmatprep.subr.bf16.mxu0 0
        %1640 = vmatpush1.bf16.xpose.msra.mxu0 0
        %1641 = vmatprep.subr.bf16.mxu0 0
        %1642 = vmatpush1.bf16.xpose.msra.mxu0 0
        %1643 = vmatprep.mubr.bf16.mxu0 0
        %1644 = vmatmul.mubr.bf16.gmra.mrb[0].mxu0 %v1606
        %v1645 = vpop.f32.mrb[0].mxu0
        %v1646 = vadd.f32 0.0, %v1645
        %v1647 = vpop.f32.mrb[0].mxu0
        %v1648 = vpop.f32.mrb[0].mxu0
        %v1649 = vpop.f32.mrb[0].mxu0
        %1650 = vdwg.mxu0
        %1651 = vxpose.xlu0.b32.start [1/16] %v1324, 128
        %1652 = vxpose.xlu0.b32.cont [2/16] %v1370, 128
        %1653 = vxpose.xlu0.b32.cont [3/16] %v1416, 128
        %1654 = vxpose.xlu0.b32.cont [4/16] %v1462, 128
        %1655 = vxpose.xlu0.b32.cont [5/16] 0.0, 128
        %1656 = vxpose.xlu0.b32.cont [6/16] 0.0, 128
        %1657 = vxpose.xlu0.b32.cont [7/16] 0.0, 128
        %1658 = vxpose.xlu0.b32.cont [8/16] 0.0, 128
        %1659 = vxpose.xlu0.b32.cont [9/16] 0.0, 128
        %1660 = vxpose.xlu0.b32.cont [10/16] 0.0, 128
        %1661 = vxpose.xlu0.b32.cont [11/16] 0.0, 128
        %1662 = vxpose.xlu0.b32.cont [12/16] 0.0, 128
        %1663 = vxpose.xlu0.b32.cont [13/16] 0.0, 128
        %1664 = vxpose.xlu0.b32.cont [14/16] 0.0, 128
        %1665 = vxpose.xlu0.b32.cont [15/16] 0.0, 128
        %1666 = vxpose.xlu0.b32.end [16/16] 0.0, 128
        %v1667 = vpop.trf.xlu0
        %v1668 = vpop.trf.xlu0
        %v1669 = vpop.trf.xlu0
        %v1670 = vpop.trf.xlu0
        %v1671 = vpop.trf.xlu0
        %v1672 = vpop.trf.xlu0
        %v1673 = vpop.trf.xlu0
        %v1674 = vpop.trf.xlu0
        %v1675 = vpop.trf.xlu0
        %v1676 = vpop.trf.xlu0
        %v1677 = vpop.trf.xlu0
        %v1678 = vpop.trf.xlu0
        %v1679 = vpop.trf.xlu0
        %v1680 = vpop.trf.xlu0
        %v1681 = vpop.trf.xlu0
        %v1682 = vpop.trf.xlu0
        %1683 = vxpose.xlu0.b32.start [1/16] %v1508, 128
        %1684 = vxpose.xlu0.b32.cont [2/16] %v1554, 128
        %1685 = vxpose.xlu0.b32.cont [3/16] %v1600, 128
        %1686 = vxpose.xlu0.b32.cont [4/16] %v1646, 128
        %1687 = vxpose.xlu0.b32.cont [5/16] 0.0, 128
        %1688 = vxpose.xlu0.b32.cont [6/16] 0.0, 128
        %1689 = vxpose.xlu0.b32.cont [7/16] 0.0, 128
        %1690 = vxpose.xlu0.b32.cont [8/16] 0.0, 128
        %1691 = vxpose.xlu0.b32.cont [9/16] 0.0, 128
        %1692 = vxpose.xlu0.b32.cont [10/16] 0.0, 128
        %1693 = vxpose.xlu0.b32.cont [11/16] 0.0, 128
        %1694 = vxpose.xlu0.b32.cont [12/16] 0.0, 128
        %1695 = vxpose.xlu0.b32.cont [13/16] 0.0, 128
        %1696 = vxpose.xlu0.b32.cont [14/16] 0.0, 128
        %1697 = vxpose.xlu0.b32.cont [15/16] 0.0, 128
        %1698 = vxpose.xlu0.b32.end [16/16] 0.0, 128
        %v1699 = vpop.trf.xlu0
        %v1700 = vpop.trf.xlu0
        %v1701 = vpop.trf.xlu0
        %v1702 = vpop.trf.xlu0
        %v1703 = vpop.trf.xlu0
        %v1704 = vpop.trf.xlu0
        %v1705 = vpop.trf.xlu0
        %v1706 = vpop.trf.xlu0
        %v1707 = vpop.trf.xlu0
        %v1708 = vpop.trf.xlu0
        %v1709 = vpop.trf.xlu0
        %v1710 = vpop.trf.xlu0
        %v1711 = vpop.trf.xlu0
        %v1712 = vpop.trf.xlu0
        %v1713 = vpop.trf.xlu0
        %v1714 = vpop.trf.xlu0
        %v1715 = vpack.c.bf16 %v1699, %v1667
        %v1716 = vlaneseq
        %v1717 = vshrl.u32 %v1716, 7
        %v1718 = vsub.s32 0, %v1717
        %v1719 = vrot.slane %v388, %v1718
        %v1724 = vunpack.c.l.b16 %v357
        %v1725 = vunpack.c.l.b16 %v358
        %v1726 = vunpack.c.l.b16 %v359
        %v1727 = vunpack.c.l.b16 %v360
        %v1728 = vpack.c.b16 %v1725, %v1724
        %v1729 = vpack.c.b16 %v1727, %v1726
        %v1733 = vsel %vm406, %v1715, 0
        %1735 = vmatprep.subr.bf16.mxu0 0
        %1736 = vmatpush1.bf16.msra.mxu0 %v1728
        %1737 = vmatprep.subr.bf16.mxu0 0
        %1738 = vmatpush1.bf16.msra.mxu0 %v1729
        %1739 = vmatprep.subr.bf16.mxu0 0
        %1740 = vmatpush1.bf16.msra.mxu0 0
        %1741 = vmatprep.subr.bf16.mxu0 0
        %1742 = vmatpush1.bf16.msra.mxu0 0
        %1743 = vmatprep.subr.bf16.mxu0 0
        %1744 = vmatpush1.bf16.msra.mxu0 0
        %1745 = vmatprep.subr.bf16.mxu0 0
        %1746 = vmatpush1.bf16.msra.mxu0 0
        %1747 = vmatprep.subr.bf16.mxu0 0
        %1748 = vmatpush1.bf16.msra.mxu0 0
        %1749 = vmatprep.subr.bf16.mxu0 0
        %1750 = vmatpush1.bf16.msra.mxu0 0
        %1751 = vmatprep.subr.bf16.mxu0 0
        %1752 = vmatpush1.bf16.msra.mxu0 0
        %1753 = vmatprep.subr.bf16.mxu0 0
        %1754 = vmatpush1.bf16.msra.mxu0 0
        %1755 = vmatprep.subr.bf16.mxu0 0
        %1756 = vmatpush1.bf16.msra.mxu0 0
        %1757 = vmatprep.subr.bf16.mxu0 0
        %1758 = vmatpush1.bf16.msra.mxu0 0
        %1759 = vmatprep.subr.bf16.mxu0 0
        %1760 = vmatpush1.bf16.msra.mxu0 0
        %1761 = vmatprep.subr.bf16.mxu0 0
        %1762 = vmatpush1.bf16.msra.mxu0 0
        %1763 = vmatprep.subr.bf16.mxu0 0
        %1764 = vmatpush1.bf16.msra.mxu0 0
        %1765 = vmatprep.subr.bf16.mxu0 0
        %1766 = vmatpush1.bf16.msra.mxu0 0
        %1767 = vmatprep.mubr.bf16.mxu0 0
        %1768 = vmatmul.mubr.bf16.gmra.mrb[0].mxu0 %v1733
        %v1769 = vpop.f32.mrb[0].mxu0
        %v1770 = vadd.f32 %v1719, %v1769
        %v1771 = vpop.f32.mrb[0].mxu0
        %v1772 = vpop.f32.mrb[0].mxu0
        %v1773 = vadd.f32 %v1719, %v1772
        %v1774 = vpop.f32.mrb[0].mxu0
        %1775 = vdwg.mxu0
        %v1776 = vadd.f32 %v1770, %v391
        %v1777 = vadd.f32 %v1773, %v392
        %v1778 = vsel %vm406, %v1776, 0.0
        %1779 = vadd.xlane.f32.xlu0 %v1778
        %v1780 = vpop.xlane.xlu0 %1779
        %v1781 = vsel %vm406, %v1777, 0.0
        %1782 = vadd.xlane.f32.xlu0 %v1781
        %v1783 = vpop.xlane.xlu0 %1782
        %v1784 = vrcp.pop 32.0
        %v1785 = vmul.f32 %v1780, %v1784
        %v1786 = vmul.f32 %v1783, %v1784
        %v1787 = vsub.f32 %v1776, %v1785
        %v1788 = vsub.f32 %v1777, %v1786
        %v1789 = vmul.f32 %v1787, %v1787
        %v1790 = vmul.f32 %v1788, %v1788
        %v1791 = vsel %vm406, %v1789, 0.0
        %1792 = vadd.xlane.f32.xlu0 %v1791
        %v1793 = vpop.xlane.xlu0 %1792
        %v1794 = vsel %vm406, %v1790, 0.0
        %1795 = vadd.xlane.f32.xlu0 %v1794
        %v1796 = vpop.xlane.xlu0 %1795
        %v1797 = vmul.f32 %v1793, %v1784
        %v1798 = vmul.f32 %v1796, %v1784
        %v1799 = vadd.f32 %v1797, 1e-05
        %v1800 = vadd.f32 %v1798, 1e-05
        %v1801 = vrsqrt.pop %v1799
        %v1802 = vrsqrt.pop %v1800
        %v1803 = vmul.f32 %v1787, %v1801
        %v1804 = vmul.f32 %v1788, %v1802
        %v1805 = vlaneseq
        %v1806 = vshrl.u32 %v1805, 7
        %v1807 = vsub.s32 1, %v1806
        %v1808 = vrot.slane %v388, %v1807
        %v1809 = vmul.f32 %v1803, %v1808
        %v1810 = vmul.f32 %v1804, %v1808
        %v1811 = vlaneseq
        %v1812 = vshrl.u32 %v1811, 7
        %v1813 = vsub.s32 2, %v1812
        %v1814 = vrot.slane %v388, %v1813
        %v1815 = vadd.f32 %v1809, %v1814
        %v1816 = vadd.f32 %v1810, %v1814
        %v1817 = vpack.c.bf16 %v1816, %v1815
        %v1819 = vlaneseq
        %v1820 = vshrl.u32 %v1819, 7
        %v1821 = vsub.s32 0, %v1820
        %v1822 = vrot.slane %v390, %v1821
        %v1828 = vunpack.c.l.b16 %v363
        %v1829 = vunpack.c.l.b16 %v364
        %v1830 = vunpack.c.l.b16 %v365
        %v1831 = vunpack.c.l.b16 %v366
        %v1832 = vpack.c.b16 %v1829, %v1828
        %v1833 = vpack.c.b16 %v1831, %v1830
        %v1837 = vsel %vm406, %v1817, 0
        %1839 = vmatprep.subr.bf16.mxu0 0
        %1840 = vmatpush1.bf16.msra.mxu0 %v1832
        %1841 = vmatprep.subr.bf16.mxu0 0
        %1842 = vmatpush1.bf16.msra.mxu0 %v1833
        %1843 = vmatprep.subr.bf16.mxu0 0
        %1844 = vmatpush1.bf16.msra.mxu0 0
        %1845 = vmatprep.subr.bf16.mxu0 0
        %1846 = vmatpush1.bf16.msra.mxu0 0
        %1847 = vmatprep.subr.bf16.mxu0 0
        %1848 = vmatpush1.bf16.msra.mxu0 0
        %1849 = vmatprep.subr.bf16.mxu0 0
        %1850 = vmatpush1.bf16.msra.mxu0 0
        %1851 = vmatprep.subr.bf16.mxu0 0
        %1852 = vmatpush1.bf16.msra.mxu0 0
        %1853 = vmatprep.subr.bf16.mxu0 0
        %1854 = vmatpush1.bf16.msra.mxu0 0
        %1855 = vmatprep.subr.bf16.mxu0 0
        %1856 = vmatpush1.bf16.msra.mxu0 0
        %1857 = vmatprep.subr.bf16.mxu0 0
        %1858 = vmatpush1.bf16.msra.mxu0 0
        %1859 = vmatprep.subr.bf16.mxu0 0
        %1860 = vmatpush1.bf16.msra.mxu0 0
        %1861 = vmatprep.subr.bf16.mxu0 0
        %1862 = vmatpush1.bf16.msra.mxu0 0
        %1863 = vmatprep.subr.bf16.mxu0 0
        %1864 = vmatpush1.bf16.msra.mxu0 0
        %1865 = vmatprep.subr.bf16.mxu0 0
        %1866 = vmatpush1.bf16.msra.mxu0 0
        %1867 = vmatprep.subr.bf16.mxu0 0
        %1868 = vmatpush1.bf16.msra.mxu0 0
        %1869 = vmatprep.subr.bf16.mxu0 0
        %1870 = vmatpush1.bf16.msra.mxu0 0
        %1871 = vmatprep.mubr.bf16.mxu0 0
        %1872 = vmatmul.mubr.bf16.gmra.mrb[0].mxu0 %v1837
        %v1873 = vpop.f32.mrb[0].mxu0
        %v1874 = vadd.f32 %v1822, %v1873
        %v1875 = vpop.f32.mrb[0].mxu0
        %v1876 = vpop.f32.mrb[0].mxu0
        %v1877 = vadd.f32 %v1822, %v1876
        %v1878 = vpop.f32.mrb[0].mxu0
        %1879 = vdwg.mxu0
        %v1880 = vmax.f32 %v1874, 0.0
        %v1881 = vmax.f32 %v1877, 0.0
        %v1882 = vpack.c.bf16 %v1881, %v1880
        %v1883 = vlaneseq
        %v1884 = vshrl.u32 %v1883, 7
        %v1885 = vsub.s32 5, %v1884
        %v1886 = vrot.slane %v388, %v1885
        %v1903 = vunpack.c.l.b16 %v370
        %v1904 = vunpack.c.l.b16 %v371
        %v1905 = vunpack.c.l.b16 %v372
        %v1906 = vunpack.c.l.b16 %v373
        %v1907 = vunpack.c.l.b16 %v374
        %v1908 = vunpack.c.l.b16 %v375
        %v1909 = vunpack.c.l.b16 %v376
        %v1910 = vunpack.c.l.b16 %v377
        %v1911 = vunpack.c.l.b16 %v378
        %v1912 = vunpack.c.l.b16 %v379
        %v1913 = vunpack.c.l.b16 %v380
        %v1914 = vunpack.c.l.b16 %v381
        %v1915 = vunpack.c.l.b16 %v382
        %v1916 = vunpack.c.l.b16 %v383
        %v1917 = vunpack.c.l.b16 %v384
        %v1918 = vunpack.c.l.b16 %v385
        %v1919 = vpack.c.b16 %v1904, %v1903
        %v1920 = vpack.c.b16 %v1906, %v1905
        %v1921 = vpack.c.b16 %v1908, %v1907
        %v1922 = vpack.c.b16 %v1910, %v1909
        %v1923 = vpack.c.b16 %v1912, %v1911
        %v1924 = vpack.c.b16 %v1914, %v1913
        %v1925 = vpack.c.b16 %v1916, %v1915
        %v1926 = vpack.c.b16 %v1918, %v1917
        %1935 = vmatprep.subr.bf16.mxu0 0
        %1936 = vmatpush1.bf16.msra.mxu0 %v1919
        %1937 = vmatprep.subr.bf16.mxu0 0
        %1938 = vmatpush1.bf16.msra.mxu0 %v1920
        %1939 = vmatprep.subr.bf16.mxu0 0
        %1940 = vmatpush1.bf16.msra.mxu0 %v1921
        %1941 = vmatprep.subr.bf16.mxu0 0
        %1942 = vmatpush1.bf16.msra.mxu0 %v1922
        %1943 = vmatprep.subr.bf16.mxu0 0
        %1944 = vmatpush1.bf16.msra.mxu0 %v1923
        %1945 = vmatprep.subr.bf16.mxu0 0
        %1946 = vmatpush1.bf16.msra.mxu0 %v1924
        %1947 = vmatprep.subr.bf16.mxu0 0
        %1948 = vmatpush1.bf16.msra.mxu0 %v1925
        %1949 = vmatprep.subr.bf16.mxu0 0
        %1950 = vmatpush1.bf16.msra.mxu0 %v1926
        %1951 = vmatprep.subr.bf16.mxu0 0
        %1952 = vmatpush1.bf16.msra.mxu0 0
        %1953 = vmatprep.subr.bf16.mxu0 0
        %1954 = vmatpush1.bf16.msra.mxu0 0
        %1955 = vmatprep.subr.bf16.mxu0 0
        %1956 = vmatpush1.bf16.msra.mxu0 0
        %1957 = vmatprep.subr.bf16.mxu0 0
        %1958 = vmatpush1.bf16.msra.mxu0 0
        %1959 = vmatprep.subr.bf16.mxu0 0
        %1960 = vmatpush1.bf16.msra.mxu0 0
        %1961 = vmatprep.subr.bf16.mxu0 0
        %1962 = vmatpush1.bf16.msra.mxu0 0
        %1963 = vmatprep.subr.bf16.mxu0 0
        %1964 = vmatpush1.bf16.msra.mxu0 0
        %1965 = vmatprep.subr.bf16.mxu0 0
        %1966 = vmatpush1.bf16.msra.mxu0 0
        %1967 = vmatprep.mubr.bf16.mxu0 0
        %1968 = vmatmul.mubr.bf16.gmra.mrb[0].mxu0 %v1882
        %v1969 = vpop.f32.mrb[0].mxu0
        %v1970 = vadd.f32 %v1886, %v1969
        %v1971 = vpop.f32.mrb[0].mxu0
        %v1972 = vpop.f32.mrb[0].mxu0
        %v1973 = vadd.f32 %v1886, %v1972
        %v1974 = vpop.f32.mrb[0].mxu0
        %1975 = vdwg.mxu0
        %v1976 = vadd.f32 %v1970, %v1815
        %v1977 = vadd.f32 %v1973, %v1816
        %v1978 = vsel %vm406, %v1976, 0.0
        %1979 = vadd.xlane.f32.xlu0 %v1978
        %v1980 = vpop.xlane.xlu0 %1979
        %v1981 = vsel %vm406, %v1977, 0.0
        %1982 = vadd.xlane.f32.xlu0 %v1981
        %v1983 = vpop.xlane.xlu0 %1982
        %v1984 = vmul.f32 %v1980, %v1784
        %v1985 = vmul.f32 %v1983, %v1784
        %v1986 = vsub.f32 %v1976, %v1984
        %v1987 = vsub.f32 %v1977, %v1985
        %v1988 = vmul.f32 %v1986, %v1986
        %v1989 = vmul.f32 %v1987, %v1987
        %v1990 = vsel %vm406, %v1988, 0.0
        %1991 = vadd.xlane.f32.xlu0 %v1990
        %v1992 = vpop.xlane.xlu0 %1991
        %v1993 = vsel %vm406, %v1989, 0.0
        %1994 = vadd.xlane.f32.xlu0 %v1993
        %v1995 = vpop.xlane.xlu0 %1994
        %v1996 = vmul.f32 %v1992, %v1784
        %v1997 = vmul.f32 %v1995, %v1784
        %v1998 = vadd.f32 %v1996, 1e-05
        %v1999 = vadd.f32 %v1997, 1e-05
        %v2000 = vrsqrt.pop %v1998
        %v2001 = vrsqrt.pop %v1999
        %v2002 = vmul.f32 %v1986, %v2000
        %v2003 = vmul.f32 %v1987, %v2001
        %v2004 = vlaneseq
        %v2005 = vshrl.u32 %v2004, 7
        %v2006 = vsub.s32 3, %v2005
        %v2007 = vrot.slane %v388, %v2006
        %v2008 = vmul.f32 %v2002, %v2007
        %v2009 = vmul.f32 %v2003, %v2007
        %v2010 = vlaneseq
        %v2011 = vshrl.u32 %v2010, 7
        %v2012 = vsub.s32 4, %v2011
        %v2013 = vrot.slane %v388, %v2012
        %v2014 = vadd.f32 %v2008, %v2013
        %v2015 = vadd.f32 %v2009, %v2013
        %2016 = vst.msk [vmem:[%s325] sm:$0xff] %vm406, %v2014
        %2017 = vst.msk [vmem:[%s325 + $0x8] sm:$0xff] %vm406, %v2015
        %s2018 = sand.u32 %s220, 1
        %s2019 = scalar_lea.sflag [#allocation3], %s2018
        %s2020 = sand.u32 %s220, 1
        %s2021 = smul.addr %s2020, 16
        %s2022 = scalar_lea.vmem [#allocation2], %s2021
        // Predicated region
        $region57: #{tpu_custom_call.1} parent=51 // pred_check
          %p2023 = pneg %p230
        $region58: #{tpu_custom_call.1} parent=51 // pred_check_branch
          %2025 = sbr.rel (%p2023) target = $region60
        $region59: #{tpu_custom_call.1} parent=51 // pred_region
          %s2026 = smul.u32 2, %s26
          %s2028 = ssub.s32 256, 256
          %2029 = vsyncadd %s2019, %s2028
          %s2030 = smul.addr %s2026, 128
          %s2031 = scalar_lea.hbm %s8, %s2030
          %s2032 = sshll.u32 %s2022, 4
          %s2033 = int_to_ptr.vmem [resolvable:$true] %s2032
          %2038 = dma.vmem_to_hbm [thread:$0]  %s2033, 256, %s2031, %s2019, 128, 128, 8
        $region60: #{tpu_custom_call.1} parent=51 // pred_fallthru
          _
      $region52: #{tpu_custom_call.1} parent=5 // pred_fallthru
        _
      %p2039 = scmp.le.s32.totalorder 2, %s17
      // Predicated region
      $region61: #{tpu_custom_call.1} parent=5 // pred_check
        %p2040 = pneg %p2039
      $region62: #{tpu_custom_call.1} parent=5 // pred_check_branch
        %2042 = sbr.rel (%p2040) target = $region64
      $region63: #{tpu_custom_call.1} parent=5 // pred_region
        %s2043 = ssub.s32 %s17, 2
        // Predicated region
        $region65: #{tpu_custom_call.1} parent=63 // pred_check
          %p2044 = pneg %p236
        $region66: #{tpu_custom_call.1} parent=63 // pred_check_branch
          %2046 = sbr.rel (%p2044) target = $region68
        $region67: #{tpu_custom_call.1} parent=63 // pred_region
          %s2047 = sand.u32 %s221, 1
          %s2048 = scalar_lea.sflag [#allocation3], %s2047
          %s2049 = sand.u32 %s221, 1
          %s2050 = smul.addr %s2049, 16
          %s2051 = scalar_lea.vmem [#allocation2], %s2050
          %2052 = dma.done %s2048, 256
        $region68: #{tpu_custom_call.1} parent=63 // pred_fallthru
          _
      $region64: #{tpu_custom_call.1} parent=5 // pred_fallthru
        _
    $region6: #{tpu_custom_call.1} parent=1 // loop_footer
      %s21 = sadd.s32 1, %s17
    $region7: #{tpu_custom_call.1} parent=1 // loop_footer_branch
      %16 = sbr.rel target = $region3
    $region8: #{tpu_custom_call.1} parent=1 // loop_exit
      _
    %2053 = vsyncpa [#allocation3], 1
    %s2054 = scalar_lea.sflag [#allocation3], 1
    %2055 = vsyncpa %s2054, 1

</llo_original>
